<compile_context>
chip_gen: v7x
topology: tpu7x:2x2x1
jax: 0.10.0
libtpu: 0.0.40
codegen_flags: <defaults>
</compile_context>

<pallas_src>
import jax
import jax.numpy as jnp
from jax.experimental import pallas as pl
from jax.experimental.pallas import tpu as pltpu

_LANE = 128


def _round_up(a: int, b: int) -> int:
    return (a + b - 1) // b * b


def _generator_kernel(x_ref, w_ref, b_ref, o_ref, logits_ref, m_ref, l_ref):
    """One (row_tile x vocab_tile) step of log_softmax(x @ W + b)."""
    j = pl.program_id(1)                 # vocab-tile index (innermost grid axis)
    nv = logits_ref.shape[0]             # number of vocab tiles (static)
    tv = logits_ref.shape[2]             # vocab tile width (static)

    # Re-initialize the online-LSE state at the first vocab tile of a row block.
    @pl.when(j == 0)
    def _init():
        m_ref[...] = jnp.full(m_ref.shape, -jnp.inf, dtype=jnp.float32)
        l_ref[...] = jnp.zeros(l_ref.shape, dtype=jnp.float32)

    # MXU matmul: native-dtype operands (no f32 upcast of x / W), f32 accumulate.
    s = jnp.dot(x_ref[...], w_ref[...], preferred_element_type=jnp.float32)
    s = s + b_ref[...]                   # bias tile is f32, (1, tv) broadcasts

    # Online (flash-style) log-sum-exp across vocab tiles.
    m_prev = m_ref[...]
    m_new = jnp.maximum(m_prev, jnp.max(s, axis=-1, keepdims=True))
    l_ref[...] = (l_ref[...] * jnp.exp(m_prev - m_new)
                  + jnp.sum(jnp.exp(s - m_new), axis=-1, keepdims=True))
    m_ref[...] = m_new

    # Stage raw f32 logits for this vocab tile (dynamic index on leading dim only).
    logits_ref[j] = s

    # After the last vocab tile: normalize and emit the full-vocab output block.
    @pl.when(j == nv - 1)
    def _finalize():
        lse = m_ref[...] + jnp.log(l_ref[...])          # (row_tile, 1)
        for jj in range(nv):                            # static unroll; dense,
            o_ref[:, jj * tv:(jj + 1) * tv] = (         # lane-aligned stores
                logits_ref[jj] - lse).astype(o_ref.dtype)


def generator_forward(x, w_t, bias, *, row_tile=None, vocab_tile=None):
    """log_softmax(x @ w_t + bias, axis=-1) as one Pallas TPU kernel.

    x:    [batch, seq, d_model]
    w_t:  [d_model, vocab]  -- pre-transposed torch Linear weight (cache this
                               layout once; do NOT re-transpose per call).
    bias: [vocab]
    Returns [batch, seq, vocab] in x.dtype.
    """
    batch, seq, d_model = x.shape
    dm2, vocab = w_t.shape
    if dm2 != d_model:
        raise ValueError("w_t must be [d_model, vocab] (pre-transposed weight).")
    out_dtype = x.dtype
    n_rows = batch * seq

    # ---- tile selection ------------------------------------------------------
    # Sublane packing: 16 rows/vreg-tile for 2-byte dtypes, 8 for 4-byte.
    pack = 16 if min(jnp.dtype(x.dtype).itemsize,
                     jnp.dtype(out_dtype).itemsize) < 4 else 8
    if row_tile is None:
        row_tile = 256                    # 256-aligned M fills the v6e/v7x MXU
    row_tile = _round_up(min(row_tile, _round_up(n_rows, pack)), pack)
    n_rows_p = _round_up(n_rows, row_tile)

    if vocab_tile is None:
        if vocab <= 2048 or vocab % _LANE != 0:
            vocab_tile = vocab            # small / ragged vocab: single tile
        else:
            vocab_tile = vocab
            for tv in (2048, 1024, 512, 256, 128):
                if vocab % tv == 0:
                    vocab_tile = tv
                    break
    if vocab % vocab_tile != 0 or (vocab_tile != vocab and vocab_tile % _LANE != 0):
        raise ValueError("vocab_tile must divide vocab and be a multiple of 128.")
    nv = vocab // vocab_tile

    # ---- inputs --------------------------------------------------------------
    x2 = x.reshape(n_rows, d_model)
    if n_rows_p != n_rows:
        x2 = jnp.pad(x2, ((0, n_rows_p - n_rows), (0, 0)))
    b2 = bias.astype(jnp.float32).reshape(1, vocab)

    grid = (n_rows_p // row_tile, nv)

    # ---- cost / VMEM hints ---------------------------------------------------
    out_isz = jnp.dtype(out_dtype).itemsize
    flops = 2 * n_rows_p * d_model * vocab
    bytes_accessed = (n_rows_p * d_model * jnp.dtype(x.dtype).itemsize
                      + grid[0] * d_model * vocab * jnp.dtype(w_t.dtype).itemsize
                      + grid[0] * vocab * 4
                      + n_rows_p * vocab * out_isz)
    cost = pl.CostEstimate(flops=flops,
                           transcendentals=n_rows_p * vocab,
                           bytes_accessed=bytes_accessed)

    vmem_est = (2 * row_tile * d_model * jnp.dtype(x.dtype).itemsize   # x (dbl buf)
                + 2 * d_model * vocab_tile * jnp.dtype(w_t.dtype).itemsize  # W tile
                + 2 * vocab_tile * 4                                    # bias tile
                + 2 * row_tile * vocab * out_isz                        # resident out
                + row_tile * vocab * 4                                  # f32 logits
                + 4 * row_tile * 4)                                     # m / l
    # NOTE: on v7x (64 MiB physical VMEM) choose row_tile / vocab_tile so this
    # estimate stays well under ~48 MiB; v5e/v6e have 128 MiB physical.
    vmem_limit = int(min(max(32 * 1024 * 1024, vmem_est + (2 << 20)),
                         96 * 1024 * 1024))

    out_p = pl.pallas_call(
        _generator_kernel,
        out_shape=jax.ShapeDtypeStruct((n_rows_p, vocab), out_dtype),
        grid_spec=pltpu.PrefetchScalarGridSpec(
            num_scalar_prefetch=0,
            grid=grid,
            in_specs=[
                # x row block: same block across the vocab axis -> loaded once
                # per row block and kept VMEM-resident while W streams.
                pl.BlockSpec((row_tile, d_model), lambda i, j: (i, 0)),
                # W vocab tile: the dominant HBM stream, pipelined by BlockSpec.
                # TODO(synk): consider pipeline_mode=pl.Buffered(3) here if the
                # W DMA is exposed at very large vocab.
                pl.BlockSpec((d_model, vocab_tile), lambda i, j: (0, j)),
                pl.BlockSpec((1, vocab_tile), lambda i, j: (0, j)),
            ],
            # Full-vocab output block, resident across the vocab axis; written
            # once (dense, lane-aligned) at the last vocab step of each row blk.
            out_specs=pl.BlockSpec((row_tile, vocab), lambda i, j: (i, 0)),
            scratch_shapes=[
                pltpu.VMEM((nv, row_tile, vocab_tile), jnp.float32),  # staged logits
                pltpu.VMEM((row_tile, 1), jnp.float32),               # running max
                pltpu.VMEM((row_tile, 1), jnp.float32),               # running sumexp
            ],
        ),
        compiler_params=pltpu.CompilerParams(
            dimension_semantics=("parallel", "arbitrary"),
            vmem_limit_bytes=vmem_limit,
        ),
        cost_estimate=cost,
    )(x2, w_t, b2)

    return out_p[:n_rows].reshape(batch, seq, vocab)


if __name__ == "__main__":
    # Small shapes that still exercise both tilings: 2 row blocks (with row
    # padding, n_rows=200 -> 256) and 2 vocab tiles.
    batch, seq, d_model, vocab = 2, 100, 128, 512

    key = jax.random.PRNGKey(0)
    kx, kw, kb = jax.random.split(key, 3)
    x = jax.random.normal(kx, (batch, seq, d_model), dtype=jnp.float32)
    # Torch-layout Linear params: weight [vocab, d_model], bias [vocab].
    weight = jax.random.normal(kw, (vocab, d_model), dtype=jnp.float32) * 0.1
    bias = jax.random.normal(kb, (vocab,), dtype=jnp.float32) * 0.1

    # Pre-transpose ONCE (cached [d_model, vocab] layout), not per forward call.
    w_t = jax.block_until_ready(jnp.asarray(weight.T))

    out = generator_forward(x, w_t, bias, row_tile=128, vocab_tile=256)
    out = jax.block_until_ready(out)

    # Plain-JAX reference.
    ref = jax.nn.log_softmax(x @ weight.T + bias, axis=-1)
    assert out.shape == (batch, seq, vocab)
    assert out.dtype == x.dtype
    max_err = float(jnp.max(jnp.abs(out - ref)))
    assert jnp.allclose(out, ref, atol=2e-4, rtol=2e-4), f"max abs err = {max_err}"

    print("KERNEL_OK")
</pallas_src>

<mosaic_0001>
module attributes {stable_mosaic.version = 11 : i64} {
  func.func @_generator_kernel(%arg0: i32, %arg1: i32, %arg2: memref<128x128xf32, #tpu.memory_space<vmem>>, %arg3: memref<128x256xf32, #tpu.memory_space<vmem>>, %arg4: memref<1x256xf32, #tpu.memory_space<vmem>>, %arg5: memref<128x512xf32, #tpu.memory_space<vmem>>, %arg6: memref<2x128x256xf32, #tpu.memory_space<vmem>>, %arg7: memref<128x1xf32, #tpu.memory_space<vmem>>, %arg8: memref<128x1xf32, #tpu.memory_space<vmem>>) attributes {dimension_semantics = [#tpu.dimension_semantics<parallel>, #tpu.dimension_semantics<arbitrary>], iteration_bounds = array<i64: 2, 2>, scalar_prefetch = 0 : i64, scratch_operands = 3 : i64, tpu.core_type = #tpu.core_type<tc>, window_params = [{transform_indices = @transform_0, window_bounds = array<i64: 128, 128>}, {transform_indices = @transform_1, window_bounds = array<i64: 128, 256>}, {transform_indices = @transform_2, window_bounds = array<i64: 1, 256>}, {transform_indices = @transform_3, window_bounds = array<i64: 128, 512>}]} {
    %c0_i32 = arith.constant 0 : i32
    %0 = arith.cmpi eq, %arg1, %c0_i32 : i32
    %1 = arith.extui %0 : i1 to i32
    %c0_i32_0 = arith.constant 0 : i32
    %2 = arith.cmpi ne, %1, %c0_i32_0 : i32
    scf.if %2 {
      %cst_19 = arith.constant 0xFF800000 : f32
      %32 = vector.broadcast %cst_19 : f32 to vector<128x1xf32>
      %c0_20 = arith.constant 0 : index
      %c0_21 = arith.constant 0 : index
      %33 = vector.load %arg7[%c0_20, %c0_21] : memref<128x1xf32, #tpu.memory_space<vmem>>, vector<128x1xf32>
      tpu.vector_store %arg7[%c0_20, %c0_21], %32 {strides = array<i32>} : memref<128x1xf32, #tpu.memory_space<vmem>>, vector<128x1xf32>,
      %cst_22 = arith.constant 0.000000e+00 : f32
      %34 = vector.broadcast %cst_22 : f32 to vector<128x1xf32>
      %c0_23 = arith.constant 0 : index
      %c0_24 = arith.constant 0 : index
      %35 = vector.load %arg8[%c0_23, %c0_24] : memref<128x1xf32, #tpu.memory_space<vmem>>, vector<128x1xf32>
      tpu.vector_store %arg8[%c0_23, %c0_24], %34 {strides = array<i32>} : memref<128x1xf32, #tpu.memory_space<vmem>>, vector<128x1xf32>,
    } else {
    }
    %c0 = arith.constant 0 : index
    %c0_1 = arith.constant 0 : index
    %3 = vector.load %arg2[%c0, %c0_1] : memref<128x128xf32, #tpu.memory_space<vmem>>, vector<128x128xf32>
    %c0_2 = arith.constant 0 : index
    %c0_3 = arith.constant 0 : index
    %4 = vector.load %arg3[%c0_2, %c0_3] : memref<128x256xf32, #tpu.memory_space<vmem>>, vector<128x256xf32>
    %cst = arith.constant dense<0.000000e+00> : vector<128x256xf32>
    %5 = tpu.matmul %3, %4, %cst {dimension_numbers = #tpu.dot_dimension_numbers<[1], [0], [0], [1], [0, 0, 1, 1], [], []>} : vector<128x128xf32>, vector<128x256xf32>, vector<128x256xf32> -> vector<128x256xf32>
    %c0_4 = arith.constant 0 : index
    %c0_5 = arith.constant 0 : index
    %6 = vector.load %arg4[%c0_4, %c0_5] : memref<1x256xf32, #tpu.memory_space<vmem>>, vector<1x256xf32>
    %7 = vector.broadcast %6 : vector<1x256xf32> to vector<128x256xf32>
    %8 = arith.addf %5, %7 : vector<128x256xf32>
    %c0_6 = arith.constant 0 : index
    %c0_7 = arith.constant 0 : index
    %9 = vector.load %arg7[%c0_6, %c0_7] : memref<128x1xf32, #tpu.memory_space<vmem>>, vector<128x1xf32>
    %cst_8 = arith.constant dense<0xFF800000> : vector<128xf32>
    %10 = vector.multi_reduction <maximumf>, %8, %cst_8 [1] : vector<128x256xf32> to vector<128xf32>
    %11 = vector.shape_cast %10 : vector<128xf32> to vector<128x1xf32>
    %12 = arith.maximumf %9, %11 : vector<128x1xf32>
    %c0_9 = arith.constant 0 : index
    %c0_10 = arith.constant 0 : index
    %13 = vector.load %arg8[%c0_9, %c0_10] : memref<128x1xf32, #tpu.memory_space<vmem>>, vector<128x1xf32>
    %14 = arith.subf %9, %12 : vector<128x1xf32>
    %15 = math.exp %14 : vector<128x1xf32>
    %16 = arith.mulf %13, %15 : vector<128x1xf32>
    %17 = vector.broadcast %12 : vector<128x1xf32> to vector<128x256xf32>
    %18 = arith.subf %8, %17 : vector<128x256xf32>
    %19 = math.exp %18 : vector<128x256xf32>
    %cst_11 = arith.constant dense<0.000000e+00> : vector<128xf32>
    %20 = vector.multi_reduction <add>, %19, %cst_11 [1] : vector<128x256xf32> to vector<128xf32>
    %21 = vector.shape_cast %20 : vector<128xf32> to vector<128x1xf32>
    %22 = arith.addf %16, %21 : vector<128x1xf32>
    %c0_12 = arith.constant 0 : index
    %c0_13 = arith.constant 0 : index
    %23 = vector.load %arg8[%c0_12, %c0_13] : memref<128x1xf32, #tpu.memory_space<vmem>>, vector<128x1xf32>
    tpu.vector_store %arg8[%c0_12, %c0_13], %22 {strides = array<i32>} : memref<128x1xf32, #tpu.memory_space<vmem>>, vector<128x1xf32>,
    %c0_14 = arith.constant 0 : index
    %c0_15 = arith.constant 0 : index
    %24 = vector.load %arg7[%c0_14, %c0_15] : memref<128x1xf32, #tpu.memory_space<vmem>>, vector<128x1xf32>
    tpu.vector_store %arg7[%c0_14, %c0_15], %12 {strides = array<i32>} : memref<128x1xf32, #tpu.memory_space<vmem>>, vector<128x1xf32>,
    %25 = arith.index_cast %arg1 : i32 to index
    %c0_16 = arith.constant 0 : index
    %c0_17 = arith.constant 0 : index
    %26 = vector.load %arg6[%25, %c0_16, %c0_17] : memref<2x128x256xf32, #tpu.memory_space<vmem>>, vector<1x128x256xf32>
    %27 = vector.shape_cast %26 : vector<1x128x256xf32> to vector<128x256xf32>
    %28 = vector.shape_cast %8 : vector<128x256xf32> to vector<1x128x256xf32>
    tpu.vector_store %arg6[%25, %c0_16, %c0_17], %28 {strides = array<i32>} : memref<2x128x256xf32, #tpu.memory_space<vmem>>, vector<1x128x256xf32>,
    %c1_i32 = arith.constant 1 : i32
    %29 = arith.cmpi eq, %arg1, %c1_i32 : i32
    %30 = arith.extui %29 : i1 to i32
    %c0_i32_18 = arith.constant 0 : i32
    %31 = arith.cmpi ne, %30, %c0_i32_18 : i32
    scf.if %31 {
      %c0_19 = arith.constant 0 : index
      %c0_20 = arith.constant 0 : index
      %32 = vector.load %arg7[%c0_19, %c0_20] : memref<128x1xf32, #tpu.memory_space<vmem>>, vector<128x1xf32>
      %c0_21 = arith.constant 0 : index
      %c0_22 = arith.constant 0 : index
      %33 = vector.load %arg8[%c0_21, %c0_22] : memref<128x1xf32, #tpu.memory_space<vmem>>, vector<128x1xf32>
      %34 = math.log %33 : vector<128x1xf32>
      %35 = arith.addf %32, %34 : vector<128x1xf32>
      %c0_23 = arith.constant 0 : index
      %c0_24 = arith.constant 0 : index
      %c0_25 = arith.constant 0 : index
      %36 = vector.load %arg6[%c0_23, %c0_24, %c0_25] : memref<2x128x256xf32, #tpu.memory_space<vmem>>, vector<1x128x256xf32>
      %37 = vector.shape_cast %36 : vector<1x128x256xf32> to vector<128x256xf32>
      %38 = vector.broadcast %35 : vector<128x1xf32> to vector<128x256xf32>
      %39 = arith.subf %37, %38 : vector<128x256xf32>
      %c0_26 = arith.constant 0 : index
      %c0_27 = arith.constant 0 : index
      %40 = vector.load %arg5[%c0_26, %c0_27] : memref<128x512xf32, #tpu.memory_space<vmem>>, vector<128x256xf32>
      tpu.vector_store %arg5[%c0_26, %c0_27], %39 {strides = array<i32>} : memref<128x512xf32, #tpu.memory_space<vmem>>, vector<128x256xf32>,
      %c1 = arith.constant 1 : index
      %c0_28 = arith.constant 0 : index
      %c0_29 = arith.constant 0 : index
      %41 = vector.load %arg6[%c1, %c0_28, %c0_29] : memref<2x128x256xf32, #tpu.memory_space<vmem>>, vector<1x128x256xf32>
      %42 = vector.shape_cast %41 : vector<1x128x256xf32> to vector<128x256xf32>
      %43 = vector.broadcast %35 : vector<128x1xf32> to vector<128x256xf32>
      %44 = arith.subf %42, %43 : vector<128x256xf32>
      %c0_30 = arith.constant 0 : index
      %c256 = arith.constant 256 : index
      %45 = vector.load %arg5[%c0_30, %c256] : memref<128x512xf32, #tpu.memory_space<vmem>>, vector<128x256xf32>
      tpu.vector_store %arg5[%c0_30, %c256], %44 {strides = array<i32>} : memref<128x512xf32, #tpu.memory_space<vmem>>, vector<128x256xf32>,
    } else {
    }
    return
  }
  func.func @transform_0(%arg0: i32, %arg1: i32) -> (i32, i32) {
    %c0_i32 = arith.constant 0 : i32
    %c0_i32_0 = arith.constant 0 : i32
    return %arg0, %c0_i32 : i32, i32
  }
  func.func @transform_1(%arg0: i32, %arg1: i32) -> (i32, i32) {
    %c0_i32 = arith.constant 0 : i32
    %c0_i32_0 = arith.constant 0 : i32
    return %c0_i32, %arg1 : i32, i32
  }
  func.func @transform_2(%arg0: i32, %arg1: i32) -> (i32, i32) {
    %c0_i32 = arith.constant 0 : i32
    %c0_i32_0 = arith.constant 0 : i32
    return %c0_i32, %arg1 : i32, i32
  }
  func.func @transform_3(%arg0: i32, %arg1: i32) -> (i32, i32) {
    %c0_i32 = arith.constant 0 : i32
    %c0_i32_0 = arith.constant 0 : i32
    return %arg0, %c0_i32 : i32, i32
  }
}

</mosaic_0001>

<llo_original>
// kernel: tpu_custom_call.1
$region0: #{tpu_custom_call.1}
  #allocation0 [shape = 'u32[]', space=smem, size = 0x4, offset = 0x4, fixed_abs, tag = 'smem constant byte address 0x4 - core index']
  #allocation1 [shape = 'u32[144,128]{1,0:T(1,128)}', space=vmem, size = 0x12000, scoped, tag = 'internal scratch']
  #allocation2 [shape = 'f32[2,128,256]{2,1,0:T(8,128)}', space=vmem, size = 0x40000, scoped, tag = 'scratch operand']
  #allocation3 [shape = 'f32[128,1]{1,0:T(8,128)}', space=vmem, size = 0x10000, scoped, tag = 'scratch operand']
  #allocation4 [shape = 'f32[128,1]{1,0:T(8,128)}', space=vmem, size = 0x10000, scoped, tag = 'scratch operand']
  %s0 = inlined_call_operand.hbm [shape: f32[256,128], index: 0, kind: input, shape index: {}]
  %s1 = inlined_call_operand.hbm [shape: f32[128,512], index: 1, kind: input, shape index: {}]
  %s2 = inlined_call_operand.vmem [shape: f32[1,512], index: 2, kind: input, shape index: {}]
  %s3 = inlined_call_operand.hbm [shape: f32[256,512], index: 3, kind: output, shape index: {}]
  %s4 = sld [smem:[#allocation0]]
  $region61: #{tpu_custom_call.1} parent=0
    _
  %s6 = ssub.s32 1, %s4
  %s7 = scalar_select 0, %s6, %s4
  $region1: #{tpu_custom_call.1} parent=0
    #allocation5 [shape = 'u8[131072]{0}', space=vmem, size = 0x20000, scoped, tag = 'input window, operand 0']
    #allocation6 [shape = 's32[2]{0}', space=sflag, size = 0x8, scoped, tag = 'scoped memory for tpu_custom_call.1']
    #allocation7 [shape = 's32[2]{0}', space=sflag, size = 0x8, scoped, tag = 'scoped memory for tpu_custom_call.1']
    #allocation8 [shape = 'u8[262144]{0}', space=vmem, size = 0x40000, scoped, tag = 'input window, operand 1']
    #allocation9 [shape = 's32[2]{0}', space=sflag, size = 0x8, scoped, tag = 'scoped memory for tpu_custom_call.1']
    #allocation10 [shape = 'u8[524288]{0}', space=vmem, size = 0x80000, scoped, tag = 'output window, operand 0']
    %8 = vsyncpa [#allocation6], 0
    %s9 = scalar_lea.sflag [#allocation6], 1
    %10 = vsyncpa %s9, 0
    %11 = vsyncpa [#allocation9], 0
    %s12 = scalar_lea.sflag [#allocation9], 1
    %13 = vsyncpa %s12, 0
    %14 = vsyncpa [#allocation7], 0
    %s15 = scalar_lea.sflag [#allocation7], 1
    %16 = vsyncpa %s15, 0
    loop: start=0, step=1, limit=6
    $region2: #{tpu_custom_call.1} parent=1 // loop_pre_header
      _
    $region3: #{tpu_custom_call.1} parent=1 // loop_header
      %s18 = sphi 0, %s22
      %p19 = scmp.ge.s32.totalorder %s18, 6
      %s25 = sphi 0, %s37
      %s26 = sphi 0, %s33
      %s27 = sphi 0, %s25
      %s28 = sphi 0, %s26
      %s29 = sphi 0, %s27
      %s30 = sphi 0, %s28
      %s40 = sphi 0, %s42
      %s43 = sphi 0, %s40
      %s44 = sphi 0, %s43
      %s60 = sphi 0, %s44
      %s66 = sphi 0, %s68
      %s69 = sphi 0, %s66
      %s70 = sphi 0, %s69
      %s86 = sphi 0, %s70
      %s92 = sphi 0, %s94
      %s95 = sphi 0, %s92
      %s96 = sphi 0, %s95
      %s112 = sphi 0, %s96
      %s118 = sphi 0, %s120
      %s121 = sphi 0, %s118
      %s122 = sphi 0, %s121
      %s138 = sphi 0, %s122
    $region4: #{tpu_custom_call.1} parent=1 // loop_header_branch
      %21 = sbr.rel (%p19) target = $region8
    $region5: #{tpu_custom_call.1} parent=1 // loop_body
      %s23 = ssub.s32 %s18, 1
      %s24 = ssub.s32 %s18, 2
      %s31 = sadd.s32 1, %s26
      %p32 = scmp.ge.s32.totalorder %s31, 2
      %s33 = scalar_select %p32, 0, %s31
      %s34 = sadd.s32 1, %s25
      %s35 = scalar_select %p32, %s34, %s25
      %p36 = scmp.ge.s32.totalorder %s35, 2
      %s37 = scalar_select %p36, 0, %s35
      %s38 = ssub.s32 %s25, %s37
      %p39 = scmp.eq.s32.totalorder %s38, 0
      %s41 = sadd.s32 %s40, 1
      %s42 = scalar_select %p39, %s40, %s41
      %p45 = pneg %p39
      %p46 = scmp.eq.s32.totalorder %s18, 3
      %p47 = por %p45, %p46
      %p48 = scmp.ne.s32.totalorder %s40, %s43
      %p49 = scmp.eq.s32.totalorder %s18, 0
      %p50 = por %p48, %p49
      %p51 = scmp.ne.s32.totalorder %s40, %s43
      %p52 = scmp.eq.s32.totalorder %s23, 3
      %p53 = por %p51, %p52
      %p54 = scmp.ne.s32.totalorder %s43, %s44
      %p55 = scmp.eq.s32.totalorder %s23, 0
      %p56 = por %p54, %p55
      %p57 = scmp.ne.s32.totalorder %s43, %s44
      %p58 = scmp.eq.s32.totalorder %s24, 3
      %p59 = por %p57, %p58
      %p61 = scmp.ne.s32.totalorder %s44, %s60
      %p62 = scmp.eq.s32.totalorder %s24, 0
      %p63 = por %p61, %p62
      %s64 = ssub.s32 %s26, %s33
      %p65 = scmp.eq.s32.totalorder %s64, 0
      %s67 = sadd.s32 %s66, 1
      %s68 = scalar_select %p65, %s66, %s67
      %p71 = pneg %p65
      %p72 = scmp.eq.s32.totalorder %s18, 3
      %p73 = por %p71, %p72
      %p74 = scmp.ne.s32.totalorder %s66, %s69
      %p75 = scmp.eq.s32.totalorder %s18, 0
      %p76 = por %p74, %p75
      %p77 = scmp.ne.s32.totalorder %s66, %s69
      %p78 = scmp.eq.s32.totalorder %s23, 3
      %p79 = por %p77, %p78
      %p80 = scmp.ne.s32.totalorder %s69, %s70
      %p81 = scmp.eq.s32.totalorder %s23, 0
      %p82 = por %p80, %p81
      %p83 = scmp.ne.s32.totalorder %s69, %s70
      %p84 = scmp.eq.s32.totalorder %s24, 3
      %p85 = por %p83, %p84
      %p87 = scmp.ne.s32.totalorder %s70, %s86
      %p88 = scmp.eq.s32.totalorder %s24, 0
      %p89 = por %p87, %p88
      %s90 = ssub.s32 %s26, %s33
      %p91 = scmp.eq.s32.totalorder %s90, 0
      %s93 = sadd.s32 %s92, 1
      %s94 = scalar_select %p91, %s92, %s93
      %p97 = pneg %p91
      %p98 = scmp.eq.s32.totalorder %s18, 3
      %p99 = por %p97, %p98
      %p100 = scmp.ne.s32.totalorder %s92, %s95
      %p101 = scmp.eq.s32.totalorder %s18, 0
      %p102 = por %p100, %p101
      %p103 = scmp.ne.s32.totalorder %s92, %s95
      %p104 = scmp.eq.s32.totalorder %s23, 3
      %p105 = por %p103, %p104
      %p106 = scmp.ne.s32.totalorder %s95, %s96
      %p107 = scmp.eq.s32.totalorder %s23, 0
      %p108 = por %p106, %p107
      %p109 = scmp.ne.s32.totalorder %s95, %s96
      %p110 = scmp.eq.s32.totalorder %s24, 3
      %p111 = por %p109, %p110
      %p113 = scmp.ne.s32.totalorder %s96, %s112
      %p114 = scmp.eq.s32.totalorder %s24, 0
      %p115 = por %p113, %p114
      %s116 = ssub.s32 %s25, %s37
      %p117 = scmp.eq.s32.totalorder %s116, 0
      %s119 = sadd.s32 %s118, 1
      %s120 = scalar_select %p117, %s118, %s119
      %p123 = pneg %p117
      %p124 = scmp.eq.s32.totalorder %s18, 3
      %p125 = por %p123, %p124
      %p126 = scmp.ne.s32.totalorder %s118, %s121
      %p127 = scmp.eq.s32.totalorder %s18, 0
      %p128 = por %p126, %p127
      %p129 = scmp.ne.s32.totalorder %s118, %s121
      %p130 = scmp.eq.s32.totalorder %s23, 3
      %p131 = por %p129, %p130
      %p132 = scmp.ne.s32.totalorder %s121, %s122
      %p133 = scmp.eq.s32.totalorder %s23, 0
      %p134 = por %p132, %p133
      %p135 = scmp.ne.s32.totalorder %s121, %s122
      %p136 = scmp.eq.s32.totalorder %s24, 3
      %p137 = por %p135, %p136
      %p139 = scmp.ne.s32.totalorder %s122, %s138
      %p140 = scmp.eq.s32.totalorder %s24, 0
      %p141 = por %p139, %p140
      %p142 = scmp.le.s32.totalorder 1, %s18
      %p143 = scmp.lt.s32.totalorder %s18, 5
      %p144 = pnand %p142, %p143
      %p145 = pneg %p144
      // Predicated region
      $region9: #{tpu_custom_call.1} parent=5 // pred_check
        _
      $region10: #{tpu_custom_call.1} parent=5 // pred_check_branch
        %147 = sbr.rel (%p144) target = $region12
      $region11: #{tpu_custom_call.1} parent=5 // pred_region
        %s148 = ssub.s32 %s18, 1
      $region12: #{tpu_custom_call.1} parent=5 // pred_fallthru
        _
      %p149 = scmp.lt.s32.totalorder %s18, 4
      // Predicated region
      $region13: #{tpu_custom_call.1} parent=5 // pred_check
        %p150 = pneg %p149
      $region14: #{tpu_custom_call.1} parent=5 // pred_check_branch
        %152 = sbr.rel (%p150) target = $region16
      $region15: #{tpu_custom_call.1} parent=5 // pred_region
        // Predicated region
        $region17: #{tpu_custom_call.1} parent=15 // pred_check
          %p153 = pneg %p50
        $region18: #{tpu_custom_call.1} parent=15 // pred_check_branch
          %155 = sbr.rel (%p153) target = $region20
        $region19: #{tpu_custom_call.1} parent=15 // pred_region
          %s156 = sand.u32 %s40, 1
          %s157 = scalar_lea.sflag [#allocation6], %s156
          %s158 = sand.u32 %s40, 1
          %s159 = smul.addr %s158, 128
          %s160 = scalar_lea.vmem [#allocation5], %s159
          %s161 = smul.u32 16, %s25
          %s163 = ssub.s32 2048, 2048
          %164 = vsyncadd %s157, %s163
          %s165 = smul.addr %s161, 128
          %s166 = scalar_lea.hbm %s0, %s165
          %s167 = sshll.u32 %s160, 4
          %s168 = int_to_ptr.vmem [resolvable:$true] %s167
          %173 = dma.hbm_to_vmem [thread:$0]  %s166, 2048, %s168, %s157, 128, 128, 8
        $region20: #{tpu_custom_call.1} parent=15 // pred_fallthru
          _
        // Predicated region
        $region21: #{tpu_custom_call.1} parent=15 // pred_check
          %p174 = pneg %p76
        $region22: #{tpu_custom_call.1} parent=15 // pred_check_branch
          %176 = sbr.rel (%p174) target = $region24
        $region23: #{tpu_custom_call.1} parent=15 // pred_region
          %s177 = sand.u32 %s66, 1
          %s178 = scalar_lea.sflag [#allocation9], %s177
          %s179 = sand.u32 %s66, 1
          %s180 = smul.addr %s179, 256
          %s181 = scalar_lea.vmem [#allocation8], %s180
          %s182 = smul.u32 2, %s26
          %s184 = ssub.s32 4096, 4096
          %185 = vsyncadd %s178, %s184
          %s186 = smul.addr %s182, 128
          %s187 = scalar_lea.hbm %s1, %s186
          %s188 = sshll.u32 %s181, 4
          %s189 = int_to_ptr.vmem [resolvable:$true] %s188
          %194 = dma.hbm_to_vmem [thread:$0]  %s187, 4096, %s189, %s178, 512, 256, 16
        $region24: #{tpu_custom_call.1} parent=15 // pred_fallthru
          _
        // Predicated region
        $region25: #{tpu_custom_call.1} parent=15 // pred_check
          %p195 = pneg %p102
        $region26: #{tpu_custom_call.1} parent=15 // pred_check_branch
          %197 = sbr.rel (%p195) target = $region28
        $region27: #{tpu_custom_call.1} parent=15 // pred_region
          %s198 = smul.u32 2, %s26
          %p199 = scmp.lt.s32.totalorder %s198, 3
          %s200 = scalar_select %p199, %s198, 3
          %s201 = scalar_lea.vmem %s2, %s200
          %s202 = smul.u32 2, %s26
        $region28: #{tpu_custom_call.1} parent=15 // pred_fallthru
          _
      $region16: #{tpu_custom_call.1} parent=5 // pred_fallthru
        _
      %p203 = scmp.le.s32.totalorder 1, %s18
      %p204 = scmp.lt.s32.totalorder %s18, 5
      %p205 = pnand %p203, %p204
      %p206 = pneg %p205
      // Predicated region
      $region29: #{tpu_custom_call.1} parent=5 // pred_check
        _
      $region30: #{tpu_custom_call.1} parent=5 // pred_check_branch
        %208 = sbr.rel (%p205) target = $region32
      $region31: #{tpu_custom_call.1} parent=5 // pred_region
        %s209 = ssub.s32 %s18, 1
        %s210 = sand.u32 %s43, 1
        %s211 = scalar_lea.sflag [#allocation6], %s210
        %s212 = sand.u32 %s43, 1
        %s213 = smul.addr %s212, 128
        %s214 = scalar_lea.vmem [#allocation5], %s213
        // Predicated region
        $region33: #{tpu_custom_call.1} parent=31 // pred_check
          %p215 = pneg %p56
        $region34: #{tpu_custom_call.1} parent=31 // pred_check_branch
          %217 = sbr.rel (%p215) target = $region36
        $region35: #{tpu_custom_call.1} parent=31 // pred_region
          %218 = dma.done %s211, 2048
        $region36: #{tpu_custom_call.1} parent=31 // pred_fallthru
          _
        %s219 = sand.u32 %s69, 1
        %s220 = scalar_lea.sflag [#allocation9], %s219
        %s221 = sand.u32 %s69, 1
        %s222 = smul.addr %s221, 256
        %s223 = scalar_lea.vmem [#allocation8], %s222
        // Predicated region
        $region37: #{tpu_custom_call.1} parent=31 // pred_check
          %p224 = pneg %p82
        $region38: #{tpu_custom_call.1} parent=31 // pred_check_branch
          %226 = sbr.rel (%p224) target = $region40
        $region39: #{tpu_custom_call.1} parent=31 // pred_region
          %227 = dma.done %s220, 4096
        $region40: #{tpu_custom_call.1} parent=31 // pred_fallthru
          _
        %s228 = sand.u32 %s43, 1
        %s229 = scalar_lea.sflag [#allocation6], %s228
        %s230 = sand.u32 %s43, 1
        %s231 = smul.addr %s230, 128
        %s232 = scalar_lea.vmem [#allocation5], %s231
        %p233 = pneg %p56
        %p234 = pneg %p53
        %s235 = sand.u32 %s69, 1
        %s236 = scalar_lea.sflag [#allocation9], %s235
        %s237 = sand.u32 %s69, 1
        %s238 = smul.addr %s237, 256
        %s239 = scalar_lea.vmem [#allocation8], %s238
        %p240 = pneg %p82
        %p241 = pneg %p79
        %s242 = smul.u32 2, %s28
        %p243 = scmp.lt.s32.totalorder %s242, 3
        %s244 = scalar_select %p243, %s242, 3
        %s245 = scalar_lea.vmem %s2, %s244
        %p246 = pneg %p108
        %p247 = pneg %p105
        %p248 = pneg %p134
        %p249 = pneg %p131
        %s250 = sand.u32 %s121, 1
        %s251 = scalar_lea.sflag [#allocation7], %s250
        %s252 = sand.u32 %s121, 1
        %s253 = smul.addr %s252, 512
        %s254 = scalar_lea.vmem [#allocation10], %s253
        %s255 = smul.u32 16, %s27
        %s256 = smul.u32 2, %s28
        %s257 = smul.u32 2, %s28
        %p258 = scmp.lt.s32.totalorder %s257, 3
        %s259 = scalar_select %p258, %s257, 3
        %s260 = scalar_lea.vmem %s2, %s259
        %s261 = smul.u32 2, %s28
        %s262 = smul.u32 16, %s27
        %p263 = scmp.eq.s32.totalorder %s28, 0
        // Predicated region
        $region41: #{tpu_custom_call.1} parent=31 // pred_check
          %p264 = pneg %p263
        $region42: #{tpu_custom_call.1} parent=31 // pred_check_branch
          %266 = sbr.rel (%p264) target = $region44
        $region43: #{tpu_custom_call.1} parent=31 // pred_region
          %vm267 = vcmask 7168
          %268 = vst.msk [vmem:[#allocation3] sm:$0xff] %vm267, -inf
          %269 = vst.msk [vmem:[#allocation3 + $0x8] sm:$0xff] %vm267, -inf
          %270 = vst.msk [vmem:[#allocation3 + $0x10] sm:$0xff] %vm267, -inf
          %271 = vst.msk [vmem:[#allocation3 + $0x18] sm:$0xff] %vm267, -inf
          %272 = vst.msk [vmem:[#allocation3 + $0x20] sm:$0xff] %vm267, -inf
          %273 = vst.msk [vmem:[#allocation3 + $0x28] sm:$0xff] %vm267, -inf
          %274 = vst.msk [vmem:[#allocation3 + $0x30] sm:$0xff] %vm267, -inf
          %275 = vst.msk [vmem:[#allocation3 + $0x38] sm:$0xff] %vm267, -inf
          %276 = vst.msk [vmem:[#allocation3 + $0x40] sm:$0xff] %vm267, -inf
          %277 = vst.msk [vmem:[#allocation3 + $0x48] sm:$0xff] %vm267, -inf
          %278 = vst.msk [vmem:[#allocation3 + $0x50] sm:$0xff] %vm267, -inf
          %279 = vst.msk [vmem:[#allocation3 + $0x58] sm:$0xff] %vm267, -inf
          %280 = vst.msk [vmem:[#allocation3 + $0x60] sm:$0xff] %vm267, -inf
          %281 = vst.msk [vmem:[#allocation3 + $0x68] sm:$0xff] %vm267, -inf
          %282 = vst.msk [vmem:[#allocation3 + $0x70] sm:$0xff] %vm267, -inf
          %283 = vst.msk [vmem:[#allocation3 + $0x78] sm:$0xff] %vm267, -inf
          %284 = vst.msk [vmem:[#allocation4] sm:$0xff] %vm267, 0.0
          %285 = vst.msk [vmem:[#allocation4 + $0x8] sm:$0xff] %vm267, 0.0
          %286 = vst.msk [vmem:[#allocation4 + $0x10] sm:$0xff] %vm267, 0.0
          %287 = vst.msk [vmem:[#allocation4 + $0x18] sm:$0xff] %vm267, 0.0
          %288 = vst.msk [vmem:[#allocation4 + $0x20] sm:$0xff] %vm267, 0.0
          %289 = vst.msk [vmem:[#allocation4 + $0x28] sm:$0xff] %vm267, 0.0
          %290 = vst.msk [vmem:[#allocation4 + $0x30] sm:$0xff] %vm267, 0.0
          %291 = vst.msk [vmem:[#allocation4 + $0x38] sm:$0xff] %vm267, 0.0
          %292 = vst.msk [vmem:[#allocation4 + $0x40] sm:$0xff] %vm267, 0.0
          %293 = vst.msk [vmem:[#allocation4 + $0x48] sm:$0xff] %vm267, 0.0
          %294 = vst.msk [vmem:[#allocation4 + $0x50] sm:$0xff] %vm267, 0.0
          %295 = vst.msk [vmem:[#allocation4 + $0x58] sm:$0xff] %vm267, 0.0
          %296 = vst.msk [vmem:[#allocation4 + $0x60] sm:$0xff] %vm267, 0.0
          %297 = vst.msk [vmem:[#allocation4 + $0x68] sm:$0xff] %vm267, 0.0
          %298 = vst.msk [vmem:[#allocation4 + $0x70] sm:$0xff] %vm267, 0.0
          %299 = vst.msk [vmem:[#allocation4 + $0x78] sm:$0xff] %vm267, 0.0
        $region44: #{tpu_custom_call.1} parent=31 // pred_fallthru
          _
        %v300 = vld [vmem:[%s214] sm:$0xff]
        %v301 = vld [vmem:[%s214 + $0x8] sm:$0xff]
        %v302 = vld [vmem:[%s214 + $0x10] sm:$0xff]
        %v303 = vld [vmem:[%s214 + $0x18] sm:$0xff]
        %v304 = vld [vmem:[%s214 + $0x20] sm:$0xff]
        %v305 = vld [vmem:[%s214 + $0x28] sm:$0xff]
        %v306 = vld [vmem:[%s214 + $0x30] sm:$0xff]
        %v307 = vld [vmem:[%s214 + $0x38] sm:$0xff]
        %v308 = vld [vmem:[%s214 + $0x40] sm:$0xff]
        %v309 = vld [vmem:[%s214 + $0x48] sm:$0xff]
        %v310 = vld [vmem:[%s214 + $0x50] sm:$0xff]
        %v311 = vld [vmem:[%s214 + $0x58] sm:$0xff]
        %v312 = vld [vmem:[%s214 + $0x60] sm:$0xff]
        %v313 = vld [vmem:[%s214 + $0x68] sm:$0xff]
        %v314 = vld [vmem:[%s214 + $0x70] sm:$0xff]
        %v315 = vld [vmem:[%s214 + $0x78] sm:$0xff]
        %v316 = vld [vmem:[%s223] sm:$0xff]
        %v317 = vld [vmem:[%s223 + $0x8] sm:$0xff]
        %v318 = vld [vmem:[%s223 + $0x10] sm:$0xff]
        %v319 = vld [vmem:[%s223 + $0x18] sm:$0xff]
        %v320 = vld [vmem:[%s223 + $0x20] sm:$0xff]
        %v321 = vld [vmem:[%s223 + $0x28] sm:$0xff]
        %v322 = vld [vmem:[%s223 + $0x30] sm:$0xff]
        %v323 = vld [vmem:[%s223 + $0x38] sm:$0xff]
        %v324 = vld [vmem:[%s223 + $0x40] sm:$0xff]
        %v325 = vld [vmem:[%s223 + $0x48] sm:$0xff]
        %v326 = vld [vmem:[%s223 + $0x50] sm:$0xff]
        %v327 = vld [vmem:[%s223 + $0x58] sm:$0xff]
        %v328 = vld [vmem:[%s223 + $0x60] sm:$0xff]
        %v329 = vld [vmem:[%s223 + $0x68] sm:$0xff]
        %v330 = vld [vmem:[%s223 + $0x70] sm:$0xff]
        %v331 = vld [vmem:[%s223 + $0x78] sm:$0xff]
        %v332 = vld [vmem:[%s223 + $0x80] sm:$0xff]
        %v333 = vld [vmem:[%s223 + $0x88] sm:$0xff]
        %v334 = vld [vmem:[%s223 + $0x90] sm:$0xff]
        %v335 = vld [vmem:[%s223 + $0x98] sm:$0xff]
        %v336 = vld [vmem:[%s223 + $0xa0] sm:$0xff]
        %v337 = vld [vmem:[%s223 + $0xa8] sm:$0xff]
        %v338 = vld [vmem:[%s223 + $0xb0] sm:$0xff]
        %v339 = vld [vmem:[%s223 + $0xb8] sm:$0xff]
        %v340 = vld [vmem:[%s223 + $0xc0] sm:$0xff]
        %v341 = vld [vmem:[%s223 + $0xc8] sm:$0xff]
        %v342 = vld [vmem:[%s223 + $0xd0] sm:$0xff]
        %v343 = vld [vmem:[%s223 + $0xd8] sm:$0xff]
        %v344 = vld [vmem:[%s223 + $0xe0] sm:$0xff]
        %v345 = vld [vmem:[%s223 + $0xe8] sm:$0xff]
        %v346 = vld [vmem:[%s223 + $0xf0] sm:$0xff]
        %v347 = vld [vmem:[%s223 + $0xf8] sm:$0xff]
        %v348 = vld [vmem:[%s260] sm:$0x3]
        %v350 = vlaneseq
        %v351 = vshrl.u32 %v350, 7
        %v352 = vsub.s32 0, %v351
        %v353 = vrot.slane %v348, %v352
        %v354 = vlaneseq
        %v355 = vshrl.u32 %v354, 7
        %v356 = vsub.s32 1, %v355
        %v357 = vrot.slane %v348, %v356
        %360 = vmatprep.subr.mxu0 %v317
        %361 = vmatpush1.msra.mxu0 %v316
        %362 = vmatprep.subr.mxu0 %v319
        %363 = vmatpush1.msra.mxu0 %v318
        %364 = vmatprep.subr.mxu0 %v321
        %365 = vmatpush1.msra.mxu0 %v320
        %366 = vmatprep.subr.mxu0 %v323
        %367 = vmatpush1.msra.mxu0 %v322
        %368 = vmatprep.subr.mxu0 %v325
        %369 = vmatpush1.msra.mxu0 %v324
        %370 = vmatprep.subr.mxu0 %v327
        %371 = vmatpush1.msra.mxu0 %v326
        %372 = vmatprep.subr.mxu0 %v329
        %373 = vmatpush1.msra.mxu0 %v328
        %374 = vmatprep.subr.mxu0 %v331
        %375 = vmatpush1.msra.mxu0 %v330
        %376 = vmatprep.subr.mxu0 %v333
        %377 = vmatpush1.msra.mxu0 %v332
        %378 = vmatprep.subr.mxu0 %v335
        %379 = vmatpush1.msra.mxu0 %v334
        %380 = vmatprep.subr.mxu0 %v337
        %381 = vmatpush1.msra.mxu0 %v336
        %382 = vmatprep.subr.mxu0 %v339
        %383 = vmatpush1.msra.mxu0 %v338
        %384 = vmatprep.subr.mxu0 %v341
        %385 = vmatpush1.msra.mxu0 %v340
        %386 = vmatprep.subr.mxu0 %v343
        %387 = vmatpush1.msra.mxu0 %v342
        %388 = vmatprep.subr.mxu0 %v345
        %389 = vmatpush1.msra.mxu0 %v344
        %390 = vmatprep.subr.mxu0 %v347
        %391 = vmatpush1.msra.mxu0 %v346
        %392 = vmatprep.subr.mxu0 0.0
        %393 = vmatpush1.msra.mxu0 0.0
        %394 = vmatprep.subr.mxu0 0.0
        %395 = vmatpush1.msra.mxu0 0.0
        %396 = vmatprep.subr.mxu0 0.0
        %397 = vmatpush1.msra.mxu0 0.0
        %398 = vmatprep.subr.mxu0 0.0
        %399 = vmatpush1.msra.mxu0 0.0
        %400 = vmatprep.subr.mxu0 0.0
        %401 = vmatpush1.msra.mxu0 0.0
        %402 = vmatprep.subr.mxu0 0.0
        %403 = vmatpush1.msra.mxu0 0.0
        %404 = vmatprep.subr.mxu0 0.0
        %405 = vmatpush1.msra.mxu0 0.0
        %406 = vmatprep.subr.mxu0 0.0
        %407 = vmatpush1.msra.mxu0 0.0
        %408 = vmatprep.subr.mxu0 0.0
        %409 = vmatpush1.msra.mxu0 0.0
        %410 = vmatprep.subr.mxu0 0.0
        %411 = vmatpush1.msra.mxu0 0.0
        %412 = vmatprep.subr.mxu0 0.0
        %413 = vmatpush1.msra.mxu0 0.0
        %414 = vmatprep.subr.mxu0 0.0
        %415 = vmatpush1.msra.mxu0 0.0
        %416 = vmatprep.subr.mxu0 0.0
        %417 = vmatpush1.msra.mxu0 0.0
        %418 = vmatprep.subr.mxu0 0.0
        %419 = vmatpush1.msra.mxu0 0.0
        %420 = vmatprep.subr.mxu0 0.0
        %421 = vmatpush1.msra.mxu0 0.0
        %422 = vmatprep.subr.mxu0 0.0
        %423 = vmatpush1.msra.mxu0 0.0
        %424 = vmatprep.mubr.f32.mxu0 0.0
        %425 = vmatmul.mubr.f32.gmra.mrb[0].mxu0 %v300
        %v426 = vpop.f32.mrb[0].mxu0
        %v427 = vadd.f32 %v353, %v426
        %v428 = vpop.f32.mrb[0].mxu0
        %v429 = vadd.f32 %v357, %v428
        %430 = vmatprep.mubr.f32.mxu0 0.0
        %431 = vmatmul.mubr.f32.gmra.mrb[0].mxu0 %v301
        %v432 = vpop.f32.mrb[0].mxu0
        %v433 = vadd.f32 %v353, %v432
        %v434 = vpop.f32.mrb[0].mxu0
        %v435 = vadd.f32 %v357, %v434
        %436 = vmatprep.mubr.f32.mxu0 0.0
        %437 = vmatmul.mubr.f32.gmra.mrb[0].mxu0 %v302
        %v438 = vpop.f32.mrb[0].mxu0
        %v439 = vadd.f32 %v353, %v438
        %v440 = vpop.f32.mrb[0].mxu0
        %v441 = vadd.f32 %v357, %v440
        %442 = vmatprep.mubr.f32.mxu0 0.0
        %443 = vmatmul.mubr.f32.gmra.mrb[0].mxu0 %v303
        %v444 = vpop.f32.mrb[0].mxu0
        %v445 = vadd.f32 %v353, %v444
        %v446 = vpop.f32.mrb[0].mxu0
        %v447 = vadd.f32 %v357, %v446
        %448 = vmatprep.mubr.f32.mxu0 0.0
        %449 = vmatmul.mubr.f32.gmra.mrb[0].mxu0 %v304
        %v450 = vpop.f32.mrb[0].mxu0
        %v451 = vadd.f32 %v353, %v450
        %v452 = vpop.f32.mrb[0].mxu0
        %v453 = vadd.f32 %v357, %v452
        %454 = vmatprep.mubr.f32.mxu0 0.0
        %455 = vmatmul.mubr.f32.gmra.mrb[0].mxu0 %v305
        %v456 = vpop.f32.mrb[0].mxu0
        %v457 = vadd.f32 %v353, %v456
        %v458 = vpop.f32.mrb[0].mxu0
        %v459 = vadd.f32 %v357, %v458
        %460 = vmatprep.mubr.f32.mxu0 0.0
        %461 = vmatmul.mubr.f32.gmra.mrb[0].mxu0 %v306
        %v462 = vpop.f32.mrb[0].mxu0
        %v463 = vadd.f32 %v353, %v462
        %v464 = vpop.f32.mrb[0].mxu0
        %v465 = vadd.f32 %v357, %v464
        %466 = vmatprep.mubr.f32.mxu0 0.0
        %467 = vmatmul.mubr.f32.gmra.mrb[0].mxu0 %v307
        %v468 = vpop.f32.mrb[0].mxu0
        %v469 = vadd.f32 %v353, %v468
        %v470 = vpop.f32.mrb[0].mxu0
        %v471 = vadd.f32 %v357, %v470
        %472 = vmatprep.mubr.f32.mxu0 0.0
        %473 = vmatmul.mubr.f32.gmra.mrb[0].mxu0 %v308
        %v474 = vpop.f32.mrb[0].mxu0
        %v475 = vadd.f32 %v353, %v474
        %v476 = vpop.f32.mrb[0].mxu0
        %v477 = vadd.f32 %v357, %v476
        %478 = vmatprep.mubr.f32.mxu0 0.0
        %479 = vmatmul.mubr.f32.gmra.mrb[0].mxu0 %v309
        %v480 = vpop.f32.mrb[0].mxu0
        %v481 = vadd.f32 %v353, %v480
        %v482 = vpop.f32.mrb[0].mxu0
        %v483 = vadd.f32 %v357, %v482
        %484 = vmatprep.mubr.f32.mxu0 0.0
        %485 = vmatmul.mubr.f32.gmra.mrb[0].mxu0 %v310
        %v486 = vpop.f32.mrb[0].mxu0
        %v487 = vadd.f32 %v353, %v486
        %v488 = vpop.f32.mrb[0].mxu0
        %v489 = vadd.f32 %v357, %v488
        %490 = vmatprep.mubr.f32.mxu0 0.0
        %491 = vmatmul.mubr.f32.gmra.mrb[0].mxu0 %v311
        %v492 = vpop.f32.mrb[0].mxu0
        %v493 = vadd.f32 %v353, %v492
        %v494 = vpop.f32.mrb[0].mxu0
        %v495 = vadd.f32 %v357, %v494
        %496 = vmatprep.mubr.f32.mxu0 0.0
        %497 = vmatmul.mubr.f32.gmra.mrb[0].mxu0 %v312
        %v498 = vpop.f32.mrb[0].mxu0
        %v499 = vadd.f32 %v353, %v498
        %v500 = vpop.f32.mrb[0].mxu0
        %v501 = vadd.f32 %v357, %v500
        %502 = vmatprep.mubr.f32.mxu0 0.0
        %503 = vmatmul.mubr.f32.gmra.mrb[0].mxu0 %v313
        %v504 = vpop.f32.mrb[0].mxu0
        %v505 = vadd.f32 %v353, %v504
        %v506 = vpop.f32.mrb[0].mxu0
        %v507 = vadd.f32 %v357, %v506
        %508 = vmatprep.mubr.f32.mxu0 0.0
        %509 = vmatmul.mubr.f32.gmra.mrb[0].mxu0 %v314
        %v510 = vpop.f32.mrb[0].mxu0
        %v511 = vadd.f32 %v353, %v510
        %v512 = vpop.f32.mrb[0].mxu0
        %v513 = vadd.f32 %v357, %v512
        %514 = vmatprep.mubr.f32.mxu0 0.0
        %515 = vmatmul.mubr.f32.gmra.mrb[0].mxu0 %v315
        %v516 = vpop.f32.mrb[0].mxu0
        %v517 = vadd.f32 %v353, %v516
        %v518 = vpop.f32.mrb[0].mxu0
        %v519 = vadd.f32 %v357, %v518
        %520 = vdwg.mxu0
        %v521 = vld [vmem:[#allocation3] sm:$0xff]
        %v522 = vld [vmem:[#allocation3 + $0x8] sm:$0xff]
        %v523 = vld [vmem:[#allocation3 + $0x10] sm:$0xff]
        %v524 = vld [vmem:[#allocation3 + $0x18] sm:$0xff]
        %v525 = vld [vmem:[#allocation3 + $0x20] sm:$0xff]
        %v526 = vld [vmem:[#allocation3 + $0x28] sm:$0xff]
        %v527 = vld [vmem:[#allocation3 + $0x30] sm:$0xff]
        %v528 = vld [vmem:[#allocation3 + $0x38] sm:$0xff]
        %v529 = vld [vmem:[#allocation3 + $0x40] sm:$0xff]
        %v530 = vld [vmem:[#allocation3 + $0x48] sm:$0xff]
        %v531 = vld [vmem:[#allocation3 + $0x50] sm:$0xff]
        %v532 = vld [vmem:[#allocation3 + $0x58] sm:$0xff]
        %v533 = vld [vmem:[#allocation3 + $0x60] sm:$0xff]
        %v534 = vld [vmem:[#allocation3 + $0x68] sm:$0xff]
        %v535 = vld [vmem:[#allocation3 + $0x70] sm:$0xff]
        %v536 = vld [vmem:[#allocation3 + $0x78] sm:$0xff]
        %v537 = vmax.f32 %v427, %v429
        %538 = vmax.xlane.f32.xlu0 %v537
        %v539 = vpop.xlane.xlu0 %538
        %v540 = vmax.f32 %v433, %v435
        %541 = vmax.xlane.f32.xlu0 %v540
        %v542 = vpop.xlane.xlu0 %541
        %v543 = vmax.f32 %v439, %v441
        %544 = vmax.xlane.f32.xlu0 %v543
        %v545 = vpop.xlane.xlu0 %544
        %v546 = vmax.f32 %v445, %v447
        %547 = vmax.xlane.f32.xlu0 %v546
        %v548 = vpop.xlane.xlu0 %547
        %v549 = vmax.f32 %v451, %v453
        %550 = vmax.xlane.f32.xlu0 %v549
        %v551 = vpop.xlane.xlu0 %550
        %v552 = vmax.f32 %v457, %v459
        %553 = vmax.xlane.f32.xlu0 %v552
        %v554 = vpop.xlane.xlu0 %553
        %v555 = vmax.f32 %v463, %v465
        %556 = vmax.xlane.f32.xlu0 %v555
        %v557 = vpop.xlane.xlu0 %556
        %v558 = vmax.f32 %v469, %v471
        %559 = vmax.xlane.f32.xlu0 %v558
        %v560 = vpop.xlane.xlu0 %559
        %v561 = vmax.f32 %v475, %v477
        %562 = vmax.xlane.f32.xlu0 %v561
        %v563 = vpop.xlane.xlu0 %562
        %v564 = vmax.f32 %v481, %v483
        %565 = vmax.xlane.f32.xlu0 %v564
        %v566 = vpop.xlane.xlu0 %565
        %v567 = vmax.f32 %v487, %v489
        %568 = vmax.xlane.f32.xlu0 %v567
        %v569 = vpop.xlane.xlu0 %568
        %v570 = vmax.f32 %v493, %v495
        %571 = vmax.xlane.f32.xlu0 %v570
        %v572 = vpop.xlane.xlu0 %571
        %v573 = vmax.f32 %v499, %v501
        %574 = vmax.xlane.f32.xlu0 %v573
        %v575 = vpop.xlane.xlu0 %574
        %v576 = vmax.f32 %v505, %v507
        %577 = vmax.xlane.f32.xlu0 %v576
        %v578 = vpop.xlane.xlu0 %577
        %v579 = vmax.f32 %v511, %v513
        %580 = vmax.xlane.f32.xlu0 %v579
        %v581 = vpop.xlane.xlu0 %580
        %v582 = vmax.f32 %v517, %v519
        %583 = vmax.xlane.f32.xlu0 %v582
        %v584 = vpop.xlane.xlu0 %583
        %v585 = vmax.f32 %v521, %v539
        %v586 = vmax.f32 %v522, %v542
        %v587 = vmax.f32 %v523, %v545
        %v588 = vmax.f32 %v524, %v548
        %v589 = vmax.f32 %v525, %v551
        %v590 = vmax.f32 %v526, %v554
        %v591 = vmax.f32 %v527, %v557
        %v592 = vmax.f32 %v528, %v560
        %v593 = vmax.f32 %v529, %v563
        %v594 = vmax.f32 %v530, %v566
        %v595 = vmax.f32 %v531, %v569
        %v596 = vmax.f32 %v532, %v572
        %v597 = vmax.f32 %v533, %v575
        %v598 = vmax.f32 %v534, %v578
        %v599 = vmax.f32 %v535, %v581
        %v600 = vmax.f32 %v536, %v584
        %v601 = vld [vmem:[#allocation4] sm:$0xff]
        %v602 = vld [vmem:[#allocation4 + $0x8] sm:$0xff]
        %v603 = vld [vmem:[#allocation4 + $0x10] sm:$0xff]
        %v604 = vld [vmem:[#allocation4 + $0x18] sm:$0xff]
        %v605 = vld [vmem:[#allocation4 + $0x20] sm:$0xff]
        %v606 = vld [vmem:[#allocation4 + $0x28] sm:$0xff]
        %v607 = vld [vmem:[#allocation4 + $0x30] sm:$0xff]
        %v608 = vld [vmem:[#allocation4 + $0x38] sm:$0xff]
        %v609 = vld [vmem:[#allocation4 + $0x40] sm:$0xff]
        %v610 = vld [vmem:[#allocation4 + $0x48] sm:$0xff]
        %v611 = vld [vmem:[#allocation4 + $0x50] sm:$0xff]
        %v612 = vld [vmem:[#allocation4 + $0x58] sm:$0xff]
        %v613 = vld [vmem:[#allocation4 + $0x60] sm:$0xff]
        %v614 = vld [vmem:[#allocation4 + $0x68] sm:$0xff]
        %v615 = vld [vmem:[#allocation4 + $0x70] sm:$0xff]
        %v616 = vld [vmem:[#allocation4 + $0x78] sm:$0xff]
        %v617 = vsub.f32 %v521, %v585
        %v618 = vsub.f32 %v522, %v586
        %v619 = vsub.f32 %v523, %v587
        %v620 = vsub.f32 %v524, %v588
        %v621 = vsub.f32 %v525, %v589
        %v622 = vsub.f32 %v526, %v590
        %v623 = vsub.f32 %v527, %v591
        %v624 = vsub.f32 %v528, %v592
        %v625 = vsub.f32 %v529, %v593
        %v626 = vsub.f32 %v530, %v594
        %v627 = vsub.f32 %v531, %v595
        %v628 = vsub.f32 %v532, %v596
        %v629 = vsub.f32 %v533, %v597
        %v630 = vsub.f32 %v534, %v598
        %v631 = vsub.f32 %v535, %v599
        %v632 = vsub.f32 %v536, %v600
        %v633 = vmul.f32 %v617, 1.442695
        %v634 = vpow.pop %v633
        %v635 = vmul.f32 %v618, 1.442695
        %v636 = vpow.pop %v635
        %v637 = vmul.f32 %v619, 1.442695
        %v638 = vpow.pop %v637
        %v639 = vmul.f32 %v620, 1.442695
        %v640 = vpow.pop %v639
        %v641 = vmul.f32 %v621, 1.442695
        %v642 = vpow.pop %v641
        %v643 = vmul.f32 %v622, 1.442695
        %v644 = vpow.pop %v643
        %v645 = vmul.f32 %v623, 1.442695
        %v646 = vpow.pop %v645
        %v647 = vmul.f32 %v624, 1.442695
        %v648 = vpow.pop %v647
        %v649 = vmul.f32 %v625, 1.442695
        %v650 = vpow.pop %v649
        %v651 = vmul.f32 %v626, 1.442695
        %v652 = vpow.pop %v651
        %v653 = vmul.f32 %v627, 1.442695
        %v654 = vpow.pop %v653
        %v655 = vmul.f32 %v628, 1.442695
        %v656 = vpow.pop %v655
        %v657 = vmul.f32 %v629, 1.442695
        %v658 = vpow.pop %v657
        %v659 = vmul.f32 %v630, 1.442695
        %v660 = vpow.pop %v659
        %v661 = vmul.f32 %v631, 1.442695
        %v662 = vpow.pop %v661
        %v663 = vmul.f32 %v632, 1.442695
        %v664 = vpow.pop %v663
        %v665 = vmul.f32 %v601, %v634
        %v666 = vmul.f32 %v602, %v636
        %v667 = vmul.f32 %v603, %v638
        %v668 = vmul.f32 %v604, %v640
        %v669 = vmul.f32 %v605, %v642
        %v670 = vmul.f32 %v606, %v644
        %v671 = vmul.f32 %v607, %v646
        %v672 = vmul.f32 %v608, %v648
        %v673 = vmul.f32 %v609, %v650
        %v674 = vmul.f32 %v610, %v652
        %v675 = vmul.f32 %v611, %v654
        %v676 = vmul.f32 %v612, %v656
        %v677 = vmul.f32 %v613, %v658
        %v678 = vmul.f32 %v614, %v660
        %v679 = vmul.f32 %v615, %v662
        %v680 = vmul.f32 %v616, %v664
        %682 = vset.pattern.permute.xlu0 0
        %683 = vperm.xlu0 %682, %v585
        %v684 = vpop.permute.xlu0 %683
        %687 = vset.pattern.permute.xlu0 0
        %688 = vperm.xlu0 %687, %v586
        %v689 = vpop.permute.xlu0 %688
        %692 = vset.pattern.permute.xlu0 0
        %693 = vperm.xlu0 %692, %v587
        %v694 = vpop.permute.xlu0 %693
        %697 = vset.pattern.permute.xlu0 0
        %698 = vperm.xlu0 %697, %v588
        %v699 = vpop.permute.xlu0 %698
        %702 = vset.pattern.permute.xlu0 0
        %703 = vperm.xlu0 %702, %v589
        %v704 = vpop.permute.xlu0 %703
        %707 = vset.pattern.permute.xlu0 0
        %708 = vperm.xlu0 %707, %v590
        %v709 = vpop.permute.xlu0 %708
        %712 = vset.pattern.permute.xlu0 0
        %713 = vperm.xlu0 %712, %v591
        %v714 = vpop.permute.xlu0 %713
        %717 = vset.pattern.permute.xlu0 0
        %718 = vperm.xlu0 %717, %v592
        %v719 = vpop.permute.xlu0 %718
        %722 = vset.pattern.permute.xlu0 0
        %723 = vperm.xlu0 %722, %v593
        %v724 = vpop.permute.xlu0 %723
        %727 = vset.pattern.permute.xlu0 0
        %728 = vperm.xlu0 %727, %v594
        %v729 = vpop.permute.xlu0 %728
        %732 = vset.pattern.permute.xlu0 0
        %733 = vperm.xlu0 %732, %v595
        %v734 = vpop.permute.xlu0 %733
        %737 = vset.pattern.permute.xlu0 0
        %738 = vperm.xlu0 %737, %v596
        %v739 = vpop.permute.xlu0 %738
        %742 = vset.pattern.permute.xlu0 0
        %743 = vperm.xlu0 %742, %v597
        %v744 = vpop.permute.xlu0 %743
        %747 = vset.pattern.permute.xlu0 0
        %748 = vperm.xlu0 %747, %v598
        %v749 = vpop.permute.xlu0 %748
        %752 = vset.pattern.permute.xlu0 0
        %753 = vperm.xlu0 %752, %v599
        %v754 = vpop.permute.xlu0 %753
        %757 = vset.pattern.permute.xlu0 0
        %758 = vperm.xlu0 %757, %v600
        %v759 = vpop.permute.xlu0 %758
        %v761 = vsub.f32 %v427, %v684
        %v762 = vsub.f32 %v429, %v684
        %v763 = vsub.f32 %v433, %v689
        %v764 = vsub.f32 %v435, %v689
        %v765 = vsub.f32 %v439, %v694
        %v766 = vsub.f32 %v441, %v694
        %v767 = vsub.f32 %v445, %v699
        %v768 = vsub.f32 %v447, %v699
        %v769 = vsub.f32 %v451, %v704
        %v770 = vsub.f32 %v453, %v704
        %v771 = vsub.f32 %v457, %v709
        %v772 = vsub.f32 %v459, %v709
        %v773 = vsub.f32 %v463, %v714
        %v774 = vsub.f32 %v465, %v714
        %v775 = vsub.f32 %v469, %v719
        %v776 = vsub.f32 %v471, %v719
        %v777 = vsub.f32 %v475, %v724
        %v778 = vsub.f32 %v477, %v724
        %v779 = vsub.f32 %v481, %v729
        %v780 = vsub.f32 %v483, %v729
        %v781 = vsub.f32 %v487, %v734
        %v782 = vsub.f32 %v489, %v734
        %v783 = vsub.f32 %v493, %v739
        %v784 = vsub.f32 %v495, %v739
        %v785 = vsub.f32 %v499, %v744
        %v786 = vsub.f32 %v501, %v744
        %v787 = vsub.f32 %v505, %v749
        %v788 = vsub.f32 %v507, %v749
        %v789 = vsub.f32 %v511, %v754
        %v790 = vsub.f32 %v513, %v754
        %v791 = vsub.f32 %v517, %v759
        %v792 = vsub.f32 %v519, %v759
        %v793 = vmul.f32 %v761, 1.442695
        %v794 = vpow.pop %v793
        %v795 = vmul.f32 %v762, 1.442695
        %v796 = vpow.pop %v795
        %v797 = vmul.f32 %v763, 1.442695
        %v798 = vpow.pop %v797
        %v799 = vmul.f32 %v764, 1.442695
        %v800 = vpow.pop %v799
        %v801 = vmul.f32 %v765, 1.442695
        %v802 = vpow.pop %v801
        %v803 = vmul.f32 %v766, 1.442695
        %v804 = vpow.pop %v803
        %v805 = vmul.f32 %v767, 1.442695
        %v806 = vpow.pop %v805
        %v807 = vmul.f32 %v768, 1.442695
        %v808 = vpow.pop %v807
        %v809 = vmul.f32 %v769, 1.442695
        %v810 = vpow.pop %v809
        %v811 = vmul.f32 %v770, 1.442695
        %v812 = vpow.pop %v811
        %v813 = vmul.f32 %v771, 1.442695
        %v814 = vpow.pop %v813
        %v815 = vmul.f32 %v772, 1.442695
        %v816 = vpow.pop %v815
        %v817 = vmul.f32 %v773, 1.442695
        %v818 = vpow.pop %v817
        %v819 = vmul.f32 %v774, 1.442695
        %v820 = vpow.pop %v819
        %v821 = vmul.f32 %v775, 1.442695
        %v822 = vpow.pop %v821
        %v823 = vmul.f32 %v776, 1.442695
        %v824 = vpow.pop %v823
        %v825 = vmul.f32 %v777, 1.442695
        %v826 = vpow.pop %v825
        %v827 = vmul.f32 %v778, 1.442695
        %v828 = vpow.pop %v827
        %v829 = vmul.f32 %v779, 1.442695
        %v830 = vpow.pop %v829
        %v831 = vmul.f32 %v780, 1.442695
        %v832 = vpow.pop %v831
        %v833 = vmul.f32 %v781, 1.442695
        %v834 = vpow.pop %v833
        %v835 = vmul.f32 %v782, 1.442695
        %v836 = vpow.pop %v835
        %v837 = vmul.f32 %v783, 1.442695
        %v838 = vpow.pop %v837
        %v839 = vmul.f32 %v784, 1.442695
        %v840 = vpow.pop %v839
        %v841 = vmul.f32 %v785, 1.442695
        %v842 = vpow.pop %v841
        %v843 = vmul.f32 %v786, 1.442695
        %v844 = vpow.pop %v843
        %v845 = vmul.f32 %v787, 1.442695
        %v846 = vpow.pop %v845
        %v847 = vmul.f32 %v788, 1.442695
        %v848 = vpow.pop %v847
        %v849 = vmul.f32 %v789, 1.442695
        %v850 = vpow.pop %v849
        %v851 = vmul.f32 %v790, 1.442695
        %v852 = vpow.pop %v851
        %v853 = vmul.f32 %v791, 1.442695
        %v854 = vpow.pop %v853
        %v855 = vmul.f32 %v792, 1.442695
        %v856 = vpow.pop %v855
        %v857 = vadd.f32 %v794, %v796
        %858 = vadd.xlane.f32.xlu0 %v857
        %v859 = vpop.xlane.xlu0 %858
        %v860 = vadd.f32 %v798, %v800
        %861 = vadd.xlane.f32.xlu0 %v860
        %v862 = vpop.xlane.xlu0 %861
        %v863 = vadd.f32 %v802, %v804
        %864 = vadd.xlane.f32.xlu0 %v863
        %v865 = vpop.xlane.xlu0 %864
        %v866 = vadd.f32 %v806, %v808
        %867 = vadd.xlane.f32.xlu0 %v866
        %v868 = vpop.xlane.xlu0 %867
        %v869 = vadd.f32 %v810, %v812
        %870 = vadd.xlane.f32.xlu0 %v869
        %v871 = vpop.xlane.xlu0 %870
        %v872 = vadd.f32 %v814, %v816
        %873 = vadd.xlane.f32.xlu0 %v872
        %v874 = vpop.xlane.xlu0 %873
        %v875 = vadd.f32 %v818, %v820
        %876 = vadd.xlane.f32.xlu0 %v875
        %v877 = vpop.xlane.xlu0 %876
        %v878 = vadd.f32 %v822, %v824
        %879 = vadd.xlane.f32.xlu0 %v878
        %v880 = vpop.xlane.xlu0 %879
        %v881 = vadd.f32 %v826, %v828
        %882 = vadd.xlane.f32.xlu0 %v881
        %v883 = vpop.xlane.xlu0 %882
        %v884 = vadd.f32 %v830, %v832
        %885 = vadd.xlane.f32.xlu0 %v884
        %v886 = vpop.xlane.xlu0 %885
        %v887 = vadd.f32 %v834, %v836
        %888 = vadd.xlane.f32.xlu0 %v887
        %v889 = vpop.xlane.xlu0 %888
        %v890 = vadd.f32 %v838, %v840
        %891 = vadd.xlane.f32.xlu0 %v890
        %v892 = vpop.xlane.xlu0 %891
        %v893 = vadd.f32 %v842, %v844
        %894 = vadd.xlane.f32.xlu0 %v893
        %v895 = vpop.xlane.xlu0 %894
        %v896 = vadd.f32 %v846, %v848
        %897 = vadd.xlane.f32.xlu0 %v896
        %v898 = vpop.xlane.xlu0 %897
        %v899 = vadd.f32 %v850, %v852
        %900 = vadd.xlane.f32.xlu0 %v899
        %v901 = vpop.xlane.xlu0 %900
        %v902 = vadd.f32 %v854, %v856
        %903 = vadd.xlane.f32.xlu0 %v902
        %v904 = vpop.xlane.xlu0 %903
        %v905 = vadd.f32 %v665, %v859
        %v906 = vadd.f32 %v666, %v862
        %v907 = vadd.f32 %v667, %v865
        %v908 = vadd.f32 %v668, %v868
        %v909 = vadd.f32 %v669, %v871
        %v910 = vadd.f32 %v670, %v874
        %v911 = vadd.f32 %v671, %v877
        %v912 = vadd.f32 %v672, %v880
        %v913 = vadd.f32 %v673, %v883
        %v914 = vadd.f32 %v674, %v886
        %v915 = vadd.f32 %v675, %v889
        %v916 = vadd.f32 %v676, %v892
        %v917 = vadd.f32 %v677, %v895
        %v918 = vadd.f32 %v678, %v898
        %v919 = vadd.f32 %v679, %v901
        %v920 = vadd.f32 %v680, %v904
        %vm921 = vcmask 7168
        %922 = vst.msk [vmem:[#allocation4] sm:$0xff] %vm921, %v905
        %923 = vst.msk [vmem:[#allocation4 + $0x8] sm:$0xff] %vm921, %v906
        %924 = vst.msk [vmem:[#allocation4 + $0x10] sm:$0xff] %vm921, %v907
        %925 = vst.msk [vmem:[#allocation4 + $0x18] sm:$0xff] %vm921, %v908
        %926 = vst.msk [vmem:[#allocation4 + $0x20] sm:$0xff] %vm921, %v909
        %927 = vst.msk [vmem:[#allocation4 + $0x28] sm:$0xff] %vm921, %v910
        %928 = vst.msk [vmem:[#allocation4 + $0x30] sm:$0xff] %vm921, %v911
        %929 = vst.msk [vmem:[#allocation4 + $0x38] sm:$0xff] %vm921, %v912
        %930 = vst.msk [vmem:[#allocation4 + $0x40] sm:$0xff] %vm921, %v913
        %931 = vst.msk [vmem:[#allocation4 + $0x48] sm:$0xff] %vm921, %v914
        %932 = vst.msk [vmem:[#allocation4 + $0x50] sm:$0xff] %vm921, %v915
        %933 = vst.msk [vmem:[#allocation4 + $0x58] sm:$0xff] %vm921, %v916
        %934 = vst.msk [vmem:[#allocation4 + $0x60] sm:$0xff] %vm921, %v917
        %935 = vst.msk [vmem:[#allocation4 + $0x68] sm:$0xff] %vm921, %v918
        %936 = vst.msk [vmem:[#allocation4 + $0x70] sm:$0xff] %vm921, %v919
        %937 = vst.msk [vmem:[#allocation4 + $0x78] sm:$0xff] %vm921, %v920
        %938 = vst.msk [vmem:[#allocation3] sm:$0xff] %vm921, %v585
        %939 = vst.msk [vmem:[#allocation3 + $0x8] sm:$0xff] %vm921, %v586
        %940 = vst.msk [vmem:[#allocation3 + $0x10] sm:$0xff] %vm921, %v587
        %941 = vst.msk [vmem:[#allocation3 + $0x18] sm:$0xff] %vm921, %v588
        %942 = vst.msk [vmem:[#allocation3 + $0x20] sm:$0xff] %vm921, %v589
        %943 = vst.msk [vmem:[#allocation3 + $0x28] sm:$0xff] %vm921, %v590
        %944 = vst.msk [vmem:[#allocation3 + $0x30] sm:$0xff] %vm921, %v591
        %945 = vst.msk [vmem:[#allocation3 + $0x38] sm:$0xff] %vm921, %v592
        %946 = vst.msk [vmem:[#allocation3 + $0x40] sm:$0xff] %vm921, %v593
        %947 = vst.msk [vmem:[#allocation3 + $0x48] sm:$0xff] %vm921, %v594
        %948 = vst.msk [vmem:[#allocation3 + $0x50] sm:$0xff] %vm921, %v595
        %949 = vst.msk [vmem:[#allocation3 + $0x58] sm:$0xff] %vm921, %v596
        %950 = vst.msk [vmem:[#allocation3 + $0x60] sm:$0xff] %vm921, %v597
        %951 = vst.msk [vmem:[#allocation3 + $0x68] sm:$0xff] %vm921, %v598
        %952 = vst.msk [vmem:[#allocation3 + $0x70] sm:$0xff] %vm921, %v599
        %953 = vst.msk [vmem:[#allocation3 + $0x78] sm:$0xff] %vm921, %v600
        %s954 = smul.u32 %s28, 32
        %s955 = smul.addr %s954, 8
        %s956 = scalar_lea.vmem [#allocation2], %s955
        %957 = vst [vmem:[%s956] sm:$0xff] %v427
        %958 = vst [vmem:[%s956 + $0x8] sm:$0xff] %v429
        %959 = vst [vmem:[%s956 + $0x10] sm:$0xff] %v433
        %960 = vst [vmem:[%s956 + $0x18] sm:$0xff] %v435
        %961 = vst [vmem:[%s956 + $0x20] sm:$0xff] %v439
        %962 = vst [vmem:[%s956 + $0x28] sm:$0xff] %v441
        %963 = vst [vmem:[%s956 + $0x30] sm:$0xff] %v445
        %964 = vst [vmem:[%s956 + $0x38] sm:$0xff] %v447
        %965 = vst [vmem:[%s956 + $0x40] sm:$0xff] %v451
        %966 = vst [vmem:[%s956 + $0x48] sm:$0xff] %v453
        %967 = vst [vmem:[%s956 + $0x50] sm:$0xff] %v457
        %968 = vst [vmem:[%s956 + $0x58] sm:$0xff] %v459
        %969 = vst [vmem:[%s956 + $0x60] sm:$0xff] %v463
        %970 = vst [vmem:[%s956 + $0x68] sm:$0xff] %v465
        %971 = vst [vmem:[%s956 + $0x70] sm:$0xff] %v469
        %972 = vst [vmem:[%s956 + $0x78] sm:$0xff] %v471
        %973 = vst [vmem:[%s956 + $0x80] sm:$0xff] %v475
        %974 = vst [vmem:[%s956 + $0x88] sm:$0xff] %v477
        %975 = vst [vmem:[%s956 + $0x90] sm:$0xff] %v481
        %976 = vst [vmem:[%s956 + $0x98] sm:$0xff] %v483
        %977 = vst [vmem:[%s956 + $0xa0] sm:$0xff] %v487
        %978 = vst [vmem:[%s956 + $0xa8] sm:$0xff] %v489
        %979 = vst [vmem:[%s956 + $0xb0] sm:$0xff] %v493
        %980 = vst [vmem:[%s956 + $0xb8] sm:$0xff] %v495
        %981 = vst [vmem:[%s956 + $0xc0] sm:$0xff] %v499
        %982 = vst [vmem:[%s956 + $0xc8] sm:$0xff] %v501
        %983 = vst [vmem:[%s956 + $0xd0] sm:$0xff] %v505
        %984 = vst [vmem:[%s956 + $0xd8] sm:$0xff] %v507
        %985 = vst [vmem:[%s956 + $0xe0] sm:$0xff] %v511
        %986 = vst [vmem:[%s956 + $0xe8] sm:$0xff] %v513
        %987 = vst [vmem:[%s956 + $0xf0] sm:$0xff] %v517
        %988 = vst [vmem:[%s956 + $0xf8] sm:$0xff] %v519
        %p989 = scmp.eq.s32.totalorder %s28, 1
        // Predicated region
        $region45: #{tpu_custom_call.1} parent=31 // pred_check
          %p990 = pneg %p989
        $region46: #{tpu_custom_call.1} parent=31 // pred_check_branch
          %992 = sbr.rel (%p990) target = $region48
        $region47: #{tpu_custom_call.1} parent=31 // pred_region
          %v993 = vld [vmem:[#allocation3] sm:$0xff]
          %v994 = vld [vmem:[#allocation3 + $0x8] sm:$0xff]
          %v995 = vld [vmem:[#allocation3 + $0x10] sm:$0xff]
          %v996 = vld [vmem:[#allocation3 + $0x18] sm:$0xff]
          %v997 = vld [vmem:[#allocation3 + $0x20] sm:$0xff]
          %v998 = vld [vmem:[#allocation3 + $0x28] sm:$0xff]
          %v999 = vld [vmem:[#allocation3 + $0x30] sm:$0xff]
          %v1000 = vld [vmem:[#allocation3 + $0x38] sm:$0xff]
          %v1001 = vld [vmem:[#allocation3 + $0x40] sm:$0xff]
          %v1002 = vld [vmem:[#allocation3 + $0x48] sm:$0xff]
          %v1003 = vld [vmem:[#allocation3 + $0x50] sm:$0xff]
          %v1004 = vld [vmem:[#allocation3 + $0x58] sm:$0xff]
          %v1005 = vld [vmem:[#allocation3 + $0x60] sm:$0xff]
          %v1006 = vld [vmem:[#allocation3 + $0x68] sm:$0xff]
          %v1007 = vld [vmem:[#allocation3 + $0x70] sm:$0xff]
          %v1008 = vld [vmem:[#allocation3 + $0x78] sm:$0xff]
          %v1009 = vld [vmem:[#allocation4] sm:$0xff]
          %v1010 = vld [vmem:[#allocation4 + $0x8] sm:$0xff]
          %v1011 = vld [vmem:[#allocation4 + $0x10] sm:$0xff]
          %v1012 = vld [vmem:[#allocation4 + $0x18] sm:$0xff]
          %v1013 = vld [vmem:[#allocation4 + $0x20] sm:$0xff]
          %v1014 = vld [vmem:[#allocation4 + $0x28] sm:$0xff]
          %v1015 = vld [vmem:[#allocation4 + $0x30] sm:$0xff]
          %v1016 = vld [vmem:[#allocation4 + $0x38] sm:$0xff]
          %v1017 = vld [vmem:[#allocation4 + $0x40] sm:$0xff]
          %v1018 = vld [vmem:[#allocation4 + $0x48] sm:$0xff]
          %v1019 = vld [vmem:[#allocation4 + $0x50] sm:$0xff]
          %v1020 = vld [vmem:[#allocation4 + $0x58] sm:$0xff]
          %v1021 = vld [vmem:[#allocation4 + $0x60] sm:$0xff]
          %v1022 = vld [vmem:[#allocation4 + $0x68] sm:$0xff]
          %v1023 = vld [vmem:[#allocation4 + $0x70] sm:$0xff]
          %v1024 = vld [vmem:[#allocation4 + $0x78] sm:$0xff]
          %v1025 = vlog2.pop %v1009
          %v1026 = vmul.f32 %v1025, 0.6931472
          %v1027 = vlog2.pop %v1010
          %v1028 = vmul.f32 %v1027, 0.6931472
          %v1029 = vlog2.pop %v1011
          %v1030 = vmul.f32 %v1029, 0.6931472
          %v1031 = vlog2.pop %v1012
          %v1032 = vmul.f32 %v1031, 0.6931472
          %v1033 = vlog2.pop %v1013
          %v1034 = vmul.f32 %v1033, 0.6931472
          %v1035 = vlog2.pop %v1014
          %v1036 = vmul.f32 %v1035, 0.6931472
          %v1037 = vlog2.pop %v1015
          %v1038 = vmul.f32 %v1037, 0.6931472
          %v1039 = vlog2.pop %v1016
          %v1040 = vmul.f32 %v1039, 0.6931472
          %v1041 = vlog2.pop %v1017
          %v1042 = vmul.f32 %v1041, 0.6931472
          %v1043 = vlog2.pop %v1018
          %v1044 = vmul.f32 %v1043, 0.6931472
          %v1045 = vlog2.pop %v1019
          %v1046 = vmul.f32 %v1045, 0.6931472
          %v1047 = vlog2.pop %v1020
          %v1048 = vmul.f32 %v1047, 0.6931472
          %v1049 = vlog2.pop %v1021
          %v1050 = vmul.f32 %v1049, 0.6931472
          %v1051 = vlog2.pop %v1022
          %v1052 = vmul.f32 %v1051, 0.6931472
          %v1053 = vlog2.pop %v1023
          %v1054 = vmul.f32 %v1053, 0.6931472
          %v1055 = vlog2.pop %v1024
          %v1056 = vmul.f32 %v1055, 0.6931472
          %v1057 = vadd.f32 %v993, %v1026
          %v1058 = vadd.f32 %v994, %v1028
          %v1059 = vadd.f32 %v995, %v1030
          %v1060 = vadd.f32 %v996, %v1032
          %v1061 = vadd.f32 %v997, %v1034
          %v1062 = vadd.f32 %v998, %v1036
          %v1063 = vadd.f32 %v999, %v1038
          %v1064 = vadd.f32 %v1000, %v1040
          %v1065 = vadd.f32 %v1001, %v1042
          %v1066 = vadd.f32 %v1002, %v1044
          %v1067 = vadd.f32 %v1003, %v1046
          %v1068 = vadd.f32 %v1004, %v1048
          %v1069 = vadd.f32 %v1005, %v1050
          %v1070 = vadd.f32 %v1006, %v1052
          %v1071 = vadd.f32 %v1007, %v1054
          %v1072 = vadd.f32 %v1008, %v1056
          %v1073 = vld [vmem:[#allocation2] sm:$0xff]
          %v1074 = vld [vmem:[#allocation2 + $0x8] sm:$0xff]
          %v1075 = vld [vmem:[#allocation2 + $0x10] sm:$0xff]
          %v1076 = vld [vmem:[#allocation2 + $0x18] sm:$0xff]
          %v1077 = vld [vmem:[#allocation2 + $0x20] sm:$0xff]
          %v1078 = vld [vmem:[#allocation2 + $0x28] sm:$0xff]
          %v1079 = vld [vmem:[#allocation2 + $0x30] sm:$0xff]
          %v1080 = vld [vmem:[#allocation2 + $0x38] sm:$0xff]
          %v1081 = vld [vmem:[#allocation2 + $0x40] sm:$0xff]
          %v1082 = vld [vmem:[#allocation2 + $0x48] sm:$0xff]
          %v1083 = vld [vmem:[#allocation2 + $0x50] sm:$0xff]
          %v1084 = vld [vmem:[#allocation2 + $0x58] sm:$0xff]
          %v1085 = vld [vmem:[#allocation2 + $0x60] sm:$0xff]
          %v1086 = vld [vmem:[#allocation2 + $0x68] sm:$0xff]
          %v1087 = vld [vmem:[#allocation2 + $0x70] sm:$0xff]
          %v1088 = vld [vmem:[#allocation2 + $0x78] sm:$0xff]
          %v1089 = vld [vmem:[#allocation2 + $0x80] sm:$0xff]
          %v1090 = vld [vmem:[#allocation2 + $0x88] sm:$0xff]
          %v1091 = vld [vmem:[#allocation2 + $0x90] sm:$0xff]
          %v1092 = vld [vmem:[#allocation2 + $0x98] sm:$0xff]
          %v1093 = vld [vmem:[#allocation2 + $0xa0] sm:$0xff]
          %v1094 = vld [vmem:[#allocation2 + $0xa8] sm:$0xff]
          %v1095 = vld [vmem:[#allocation2 + $0xb0] sm:$0xff]
          %v1096 = vld [vmem:[#allocation2 + $0xb8] sm:$0xff]
          %v1097 = vld [vmem:[#allocation2 + $0xc0] sm:$0xff]
          %v1098 = vld [vmem:[#allocation2 + $0xc8] sm:$0xff]
          %v1099 = vld [vmem:[#allocation2 + $0xd0] sm:$0xff]
          %v1100 = vld [vmem:[#allocation2 + $0xd8] sm:$0xff]
          %v1101 = vld [vmem:[#allocation2 + $0xe0] sm:$0xff]
          %v1102 = vld [vmem:[#allocation2 + $0xe8] sm:$0xff]
          %v1103 = vld [vmem:[#allocation2 + $0xf0] sm:$0xff]
          %v1104 = vld [vmem:[#allocation2 + $0xf8] sm:$0xff]
          %1106 = vset.pattern.permute.xlu0 0
          %1107 = vperm.xlu0 %1106, %v1057
          %v1108 = vpop.permute.xlu0 %1107
          %1111 = vset.pattern.permute.xlu0 0
          %1112 = vperm.xlu0 %1111, %v1058
          %v1113 = vpop.permute.xlu0 %1112
          %1116 = vset.pattern.permute.xlu0 0
          %1117 = vperm.xlu0 %1116, %v1059
          %v1118 = vpop.permute.xlu0 %1117
          %1121 = vset.pattern.permute.xlu0 0
          %1122 = vperm.xlu0 %1121, %v1060
          %v1123 = vpop.permute.xlu0 %1122
          %1126 = vset.pattern.permute.xlu0 0
          %1127 = vperm.xlu0 %1126, %v1061
          %v1128 = vpop.permute.xlu0 %1127
          %1131 = vset.pattern.permute.xlu0 0
          %1132 = vperm.xlu0 %1131, %v1062
          %v1133 = vpop.permute.xlu0 %1132
          %1136 = vset.pattern.permute.xlu0 0
          %1137 = vperm.xlu0 %1136, %v1063
          %v1138 = vpop.permute.xlu0 %1137
          %1141 = vset.pattern.permute.xlu0 0
          %1142 = vperm.xlu0 %1141, %v1064
          %v1143 = vpop.permute.xlu0 %1142
          %1146 = vset.pattern.permute.xlu0 0
          %1147 = vperm.xlu0 %1146, %v1065
          %v1148 = vpop.permute.xlu0 %1147
          %1151 = vset.pattern.permute.xlu0 0
          %1152 = vperm.xlu0 %1151, %v1066
          %v1153 = vpop.permute.xlu0 %1152
          %1156 = vset.pattern.permute.xlu0 0
          %1157 = vperm.xlu0 %1156, %v1067
          %v1158 = vpop.permute.xlu0 %1157
          %1161 = vset.pattern.permute.xlu0 0
          %1162 = vperm.xlu0 %1161, %v1068
          %v1163 = vpop.permute.xlu0 %1162
          %1166 = vset.pattern.permute.xlu0 0
          %1167 = vperm.xlu0 %1166, %v1069
          %v1168 = vpop.permute.xlu0 %1167
          %1171 = vset.pattern.permute.xlu0 0
          %1172 = vperm.xlu0 %1171, %v1070
          %v1173 = vpop.permute.xlu0 %1172
          %1176 = vset.pattern.permute.xlu0 0
          %1177 = vperm.xlu0 %1176, %v1071
          %v1178 = vpop.permute.xlu0 %1177
          %1181 = vset.pattern.permute.xlu0 0
          %1182 = vperm.xlu0 %1181, %v1072
          %v1183 = vpop.permute.xlu0 %1182
          %v1185 = vsub.f32 %v1073, %v1108
          %v1186 = vsub.f32 %v1074, %v1108
          %v1187 = vsub.f32 %v1075, %v1113
          %v1188 = vsub.f32 %v1076, %v1113
          %v1189 = vsub.f32 %v1077, %v1118
          %v1190 = vsub.f32 %v1078, %v1118
          %v1191 = vsub.f32 %v1079, %v1123
          %v1192 = vsub.f32 %v1080, %v1123
          %v1193 = vsub.f32 %v1081, %v1128
          %v1194 = vsub.f32 %v1082, %v1128
          %v1195 = vsub.f32 %v1083, %v1133
          %v1196 = vsub.f32 %v1084, %v1133
          %v1197 = vsub.f32 %v1085, %v1138
          %v1198 = vsub.f32 %v1086, %v1138
          %v1199 = vsub.f32 %v1087, %v1143
          %v1200 = vsub.f32 %v1088, %v1143
          %v1201 = vsub.f32 %v1089, %v1148
          %v1202 = vsub.f32 %v1090, %v1148
          %v1203 = vsub.f32 %v1091, %v1153
          %v1204 = vsub.f32 %v1092, %v1153
          %v1205 = vsub.f32 %v1093, %v1158
          %v1206 = vsub.f32 %v1094, %v1158
          %v1207 = vsub.f32 %v1095, %v1163
          %v1208 = vsub.f32 %v1096, %v1163
          %v1209 = vsub.f32 %v1097, %v1168
          %v1210 = vsub.f32 %v1098, %v1168
          %v1211 = vsub.f32 %v1099, %v1173
          %v1212 = vsub.f32 %v1100, %v1173
          %v1213 = vsub.f32 %v1101, %v1178
          %v1214 = vsub.f32 %v1102, %v1178
          %v1215 = vsub.f32 %v1103, %v1183
          %v1216 = vsub.f32 %v1104, %v1183
          %1217 = vst [vmem:[%s254] sm:$0xff] %v1185
          %1218 = vst [vmem:[%s254 + $0x8] sm:$0xff] %v1186
          %1219 = vst [vmem:[%s254 + $0x20] sm:$0xff] %v1187
          %1220 = vst [vmem:[%s254 + $0x28] sm:$0xff] %v1188
          %1221 = vst [vmem:[%s254 + $0x40] sm:$0xff] %v1189
          %1222 = vst [vmem:[%s254 + $0x48] sm:$0xff] %v1190
          %1223 = vst [vmem:[%s254 + $0x60] sm:$0xff] %v1191
          %1224 = vst [vmem:[%s254 + $0x68] sm:$0xff] %v1192
          %1225 = vst [vmem:[%s254 + $0x80] sm:$0xff] %v1193
          %1226 = vst [vmem:[%s254 + $0x88] sm:$0xff] %v1194
          %1227 = vst [vmem:[%s254 + $0xa0] sm:$0xff] %v1195
          %1228 = vst [vmem:[%s254 + $0xa8] sm:$0xff] %v1196
          %1229 = vst [vmem:[%s254 + $0xc0] sm:$0xff] %v1197
          %1230 = vst [vmem:[%s254 + $0xc8] sm:$0xff] %v1198
          %1231 = vst [vmem:[%s254 + $0xe0] sm:$0xff] %v1199
          %1232 = vst [vmem:[%s254 + $0xe8] sm:$0xff] %v1200
          %1233 = vst [vmem:[%s254 + $0x100] sm:$0xff] %v1201
          %1234 = vst [vmem:[%s254 + $0x108] sm:$0xff] %v1202
          %1235 = vst [vmem:[%s254 + $0x120] sm:$0xff] %v1203
          %1236 = vst [vmem:[%s254 + $0x128] sm:$0xff] %v1204
          %1237 = vst [vmem:[%s254 + $0x140] sm:$0xff] %v1205
          %1238 = vst [vmem:[%s254 + $0x148] sm:$0xff] %v1206
          %1239 = vst [vmem:[%s254 + $0x160] sm:$0xff] %v1207
          %1240 = vst [vmem:[%s254 + $0x168] sm:$0xff] %v1208
          %1241 = vst [vmem:[%s254 + $0x180] sm:$0xff] %v1209
          %1242 = vst [vmem:[%s254 + $0x188] sm:$0xff] %v1210
          %1243 = vst [vmem:[%s254 + $0x1a0] sm:$0xff] %v1211
          %1244 = vst [vmem:[%s254 + $0x1a8] sm:$0xff] %v1212
          %1245 = vst [vmem:[%s254 + $0x1c0] sm:$0xff] %v1213
          %1246 = vst [vmem:[%s254 + $0x1c8] sm:$0xff] %v1214
          %1247 = vst [vmem:[%s254 + $0x1e0] sm:$0xff] %v1215
          %1248 = vst [vmem:[%s254 + $0x1e8] sm:$0xff] %v1216
          %s1249 = scalar_lea.vmem [#allocation2], 256
          %v1250 = vld [vmem:[%s1249] sm:$0xff]
          %v1251 = vld [vmem:[%s1249 + $0x8] sm:$0xff]
          %v1252 = vld [vmem:[%s1249 + $0x10] sm:$0xff]
          %v1253 = vld [vmem:[%s1249 + $0x18] sm:$0xff]
          %v1254 = vld [vmem:[%s1249 + $0x20] sm:$0xff]
          %v1255 = vld [vmem:[%s1249 + $0x28] sm:$0xff]
          %v1256 = vld [vmem:[%s1249 + $0x30] sm:$0xff]
          %v1257 = vld [vmem:[%s1249 + $0x38] sm:$0xff]
          %v1258 = vld [vmem:[%s1249 + $0x40] sm:$0xff]
          %v1259 = vld [vmem:[%s1249 + $0x48] sm:$0xff]
          %v1260 = vld [vmem:[%s1249 + $0x50] sm:$0xff]
          %v1261 = vld [vmem:[%s1249 + $0x58] sm:$0xff]
          %v1262 = vld [vmem:[%s1249 + $0x60] sm:$0xff]
          %v1263 = vld [vmem:[%s1249 + $0x68] sm:$0xff]
          %v1264 = vld [vmem:[%s1249 + $0x70] sm:$0xff]
          %v1265 = vld [vmem:[%s1249 + $0x78] sm:$0xff]
          %v1266 = vld [vmem:[%s1249 + $0x80] sm:$0xff]
          %v1267 = vld [vmem:[%s1249 + $0x88] sm:$0xff]
          %v1268 = vld [vmem:[%s1249 + $0x90] sm:$0xff]
          %v1269 = vld [vmem:[%s1249 + $0x98] sm:$0xff]
          %v1270 = vld [vmem:[%s1249 + $0xa0] sm:$0xff]
          %v1271 = vld [vmem:[%s1249 + $0xa8] sm:$0xff]
          %v1272 = vld [vmem:[%s1249 + $0xb0] sm:$0xff]
          %v1273 = vld [vmem:[%s1249 + $0xb8] sm:$0xff]
          %v1274 = vld [vmem:[%s1249 + $0xc0] sm:$0xff]
          %v1275 = vld [vmem:[%s1249 + $0xc8] sm:$0xff]
          %v1276 = vld [vmem:[%s1249 + $0xd0] sm:$0xff]
          %v1277 = vld [vmem:[%s1249 + $0xd8] sm:$0xff]
          %v1278 = vld [vmem:[%s1249 + $0xe0] sm:$0xff]
          %v1279 = vld [vmem:[%s1249 + $0xe8] sm:$0xff]
          %v1280 = vld [vmem:[%s1249 + $0xf0] sm:$0xff]
          %v1281 = vld [vmem:[%s1249 + $0xf8] sm:$0xff]
          %v1282 = vsub.f32 %v1250, %v1108
          %v1283 = vsub.f32 %v1251, %v1108
          %v1284 = vsub.f32 %v1252, %v1113
          %v1285 = vsub.f32 %v1253, %v1113
          %v1286 = vsub.f32 %v1254, %v1118
          %v1287 = vsub.f32 %v1255, %v1118
          %v1288 = vsub.f32 %v1256, %v1123
          %v1289 = vsub.f32 %v1257, %v1123
          %v1290 = vsub.f32 %v1258, %v1128
          %v1291 = vsub.f32 %v1259, %v1128
          %v1292 = vsub.f32 %v1260, %v1133
          %v1293 = vsub.f32 %v1261, %v1133
          %v1294 = vsub.f32 %v1262, %v1138
          %v1295 = vsub.f32 %v1263, %v1138
          %v1296 = vsub.f32 %v1264, %v1143
          %v1297 = vsub.f32 %v1265, %v1143
          %v1298 = vsub.f32 %v1266, %v1148
          %v1299 = vsub.f32 %v1267, %v1148
          %v1300 = vsub.f32 %v1268, %v1153
          %v1301 = vsub.f32 %v1269, %v1153
          %v1302 = vsub.f32 %v1270, %v1158
          %v1303 = vsub.f32 %v1271, %v1158
          %v1304 = vsub.f32 %v1272, %v1163
          %v1305 = vsub.f32 %v1273, %v1163
          %v1306 = vsub.f32 %v1274, %v1168
          %v1307 = vsub.f32 %v1275, %v1168
          %v1308 = vsub.f32 %v1276, %v1173
          %v1309 = vsub.f32 %v1277, %v1173
          %v1310 = vsub.f32 %v1278, %v1178
          %v1311 = vsub.f32 %v1279, %v1178
          %v1312 = vsub.f32 %v1280, %v1183
          %v1313 = vsub.f32 %v1281, %v1183
          %1314 = vst [vmem:[%s254 + $0x10] sm:$0xff] %v1282
          %1315 = vst [vmem:[%s254 + $0x18] sm:$0xff] %v1283
          %1316 = vst [vmem:[%s254 + $0x30] sm:$0xff] %v1284
          %1317 = vst [vmem:[%s254 + $0x38] sm:$0xff] %v1285
          %1318 = vst [vmem:[%s254 + $0x50] sm:$0xff] %v1286
          %1319 = vst [vmem:[%s254 + $0x58] sm:$0xff] %v1287
          %1320 = vst [vmem:[%s254 + $0x70] sm:$0xff] %v1288
          %1321 = vst [vmem:[%s254 + $0x78] sm:$0xff] %v1289
          %1322 = vst [vmem:[%s254 + $0x90] sm:$0xff] %v1290
          %1323 = vst [vmem:[%s254 + $0x98] sm:$0xff] %v1291
          %1324 = vst [vmem:[%s254 + $0xb0] sm:$0xff] %v1292
          %1325 = vst [vmem:[%s254 + $0xb8] sm:$0xff] %v1293
          %1326 = vst [vmem:[%s254 + $0xd0] sm:$0xff] %v1294
          %1327 = vst [vmem:[%s254 + $0xd8] sm:$0xff] %v1295
          %1328 = vst [vmem:[%s254 + $0xf0] sm:$0xff] %v1296
          %1329 = vst [vmem:[%s254 + $0xf8] sm:$0xff] %v1297
          %1330 = vst [vmem:[%s254 + $0x110] sm:$0xff] %v1298
          %1331 = vst [vmem:[%s254 + $0x118] sm:$0xff] %v1299
          %1332 = vst [vmem:[%s254 + $0x130] sm:$0xff] %v1300
          %1333 = vst [vmem:[%s254 + $0x138] sm:$0xff] %v1301
          %1334 = vst [vmem:[%s254 + $0x150] sm:$0xff] %v1302
          %1335 = vst [vmem:[%s254 + $0x158] sm:$0xff] %v1303
          %1336 = vst [vmem:[%s254 + $0x170] sm:$0xff] %v1304
          %1337 = vst [vmem:[%s254 + $0x178] sm:$0xff] %v1305
          %1338 = vst [vmem:[%s254 + $0x190] sm:$0xff] %v1306
          %1339 = vst [vmem:[%s254 + $0x198] sm:$0xff] %v1307
          %1340 = vst [vmem:[%s254 + $0x1b0] sm:$0xff] %v1308
          %1341 = vst [vmem:[%s254 + $0x1b8] sm:$0xff] %v1309
          %1342 = vst [vmem:[%s254 + $0x1d0] sm:$0xff] %v1310
          %1343 = vst [vmem:[%s254 + $0x1d8] sm:$0xff] %v1311
          %1344 = vst [vmem:[%s254 + $0x1f0] sm:$0xff] %v1312
          %1345 = vst [vmem:[%s254 + $0x1f8] sm:$0xff] %v1313
        $region48: #{tpu_custom_call.1} parent=31 // pred_fallthru
          _
        %s1346 = sand.u32 %s121, 1
        %s1347 = scalar_lea.sflag [#allocation7], %s1346
        %s1348 = sand.u32 %s121, 1
        %s1349 = smul.addr %s1348, 512
        %s1350 = scalar_lea.vmem [#allocation10], %s1349
        // Predicated region
        $region49: #{tpu_custom_call.1} parent=31 // pred_check
          %p1351 = pneg %p131
        $region50: #{tpu_custom_call.1} parent=31 // pred_check_branch
          %1353 = sbr.rel (%p1351) target = $region52
        $region51: #{tpu_custom_call.1} parent=31 // pred_region
          %s1354 = smul.u32 16, %s27
          %s1356 = ssub.s32 8192, 8192
          %1357 = vsyncadd %s1347, %s1356
          %s1358 = smul.addr %s1354, 4
          %s1359 = smul.addr %s1358, 128
          %s1360 = scalar_lea.hbm %s3, %s1359
          %s1361 = sshll.u32 %s1350, 4
          %s1362 = int_to_ptr.vmem [resolvable:$true] %s1361
          %1367 = dma.vmem_to_hbm [thread:$0]  %s1362, 8192, %s1360, %s1347, 512, 512, 32
        $region52: #{tpu_custom_call.1} parent=31 // pred_fallthru
          _
      $region32: #{tpu_custom_call.1} parent=5 // pred_fallthru
        _
      %p1368 = scmp.le.s32.totalorder 2, %s18
      // Predicated region
      $region53: #{tpu_custom_call.1} parent=5 // pred_check
        %p1369 = pneg %p1368
      $region54: #{tpu_custom_call.1} parent=5 // pred_check_branch
        %1371 = sbr.rel (%p1369) target = $region56
      $region55: #{tpu_custom_call.1} parent=5 // pred_region
        %s1372 = ssub.s32 %s18, 2
        // Predicated region
        $region57: #{tpu_custom_call.1} parent=55 // pred_check
          %p1373 = pneg %p137
        $region58: #{tpu_custom_call.1} parent=55 // pred_check_branch
          %1375 = sbr.rel (%p1373) target = $region60
        $region59: #{tpu_custom_call.1} parent=55 // pred_region
          %s1376 = sand.u32 %s122, 1
          %s1377 = scalar_lea.sflag [#allocation7], %s1376
          %s1378 = sand.u32 %s122, 1
          %s1379 = smul.addr %s1378, 512
          %s1380 = scalar_lea.vmem [#allocation10], %s1379
          %1381 = dma.done %s1377, 8192
        $region60: #{tpu_custom_call.1} parent=55 // pred_fallthru
          _
      $region56: #{tpu_custom_call.1} parent=5 // pred_fallthru
        _
    $region6: #{tpu_custom_call.1} parent=1 // loop_footer
      %s22 = sadd.s32 1, %s18
    $region7: #{tpu_custom_call.1} parent=1 // loop_footer_branch
      %17 = sbr.rel target = $region3
    $region8: #{tpu_custom_call.1} parent=1 // loop_exit
      _
    %1382 = vsyncpa [#allocation6], 1
    %s1383 = scalar_lea.sflag [#allocation6], 1
    %1384 = vsyncpa %s1383, 1
    %1385 = vsyncpa [#allocation9], 1
    %s1386 = scalar_lea.sflag [#allocation9], 1
    %1387 = vsyncpa %s1386, 1
    %1388 = vsyncpa [#allocation7], 1
    %s1389 = scalar_lea.sflag [#allocation7], 1
    %1390 = vsyncpa %s1389, 1

</llo_original>
